<compile_context>
chip_gen: v7x
topology: tpu7x:2x2x1
jax: 0.10.0
libtpu: 0.0.40
codegen_flags: <defaults>
</compile_context>

<pallas_src>
import functools

import jax
import jax.numpy as jnp
from jax.experimental import pallas as pl
from jax.experimental.pallas import tpu as pltpu


def residual_block_kernel(x_ref, w1_ref, w2_ref, s1_ref, b1_ref, s2_ref,
                          b2_ref, out_ref, pad_ref, *, H, W):
    HW = H * W
    P = W + 1                      # flat halo: one row + one pixel each side
    cdt = x_ref.dtype              # native dtype fed to the MXU

    # Column index of every flattened spatial position.  Horizontal-wrap
    # masks are needed only for dx = -1 / +1 taps; vertically out-of-range
    # taps read the zeroed halo strips and need no mask.
    col = jax.lax.broadcasted_iota(jnp.int32, (1, HW), 1) % W
    not_first_col = col != 0
    not_last_col = col != (W - 1)

    # Zero only the constant halo strips (2 * (W+1) lanes); the interior is
    # always fully overwritten below.  Re-done every step so correctness does
    # not depend on how the parallel batch axis is split across cores.
    zeros_halo = jnp.zeros((pad_ref.shape[0], P), pad_ref.dtype)
    pad_ref[:, 0:P] = zeros_halo
    pad_ref[:, P + HW:] = zeros_halo

    def conv3x3(w_ref):
        # pad_ref[:, P:P+HW] holds the conv input (C, H*W) in native dtype.
        cout = w_ref.shape[1]
        acc = jnp.zeros((cout, HW), jnp.float32)
        t = 0
        for dy in (-1, 0, 1):
            for dx in (-1, 0, 1):
                start = P + dy * W + dx            # static lane offset
                s = pad_ref[:, start:start + HW]   # (Cin, H*W) shifted window
                if dx == -1:
                    s = jnp.where(not_first_col, s, jnp.zeros_like(s))
                elif dx == 1:
                    s = jnp.where(not_last_col, s, jnp.zeros_like(s))
                acc = acc + jnp.dot(w_ref[t], s,
                                    preferred_element_type=jnp.float32)
                t += 1
        return acc                                  # (Cout, H*W) float32

    xf = x_ref[0]                                   # (Cin, H*W) native dtype
    pad_ref[:, P:P + HW] = xf

    # ---- conv1 -> bn1 (folded affine) -> relu ----
    y1 = conv3x3(w1_ref)
    y1 = jnp.maximum(y1 * s1_ref[...] + b1_ref[...], 0.0)

    # ---- conv2 -> bn2 (folded affine) ----
    pad_ref[:, P:P + HW] = y1.astype(cdt)
    y2 = conv3x3(w2_ref)
    y2 = y2 * s2_ref[...] + b2_ref[...]

    # ---- identity residual add -> relu ----
    out = jnp.maximum(y2 + xf.astype(jnp.float32), 0.0)
    out_ref[0] = out.astype(out_ref.dtype)


def residual_block(x_nchw, w1_oihw, w2_oihw, bn1, bn2, eps=1e-5):
    """Forward pass of ResidualBlock (stride=1, downsample=None), eval-mode BN."""
    gamma1, beta1, mean1, var1 = bn1
    gamma2, beta2, mean2, var2 = bn2

    # Fold eval-mode BN running stats into per-channel scale/bias, shaped
    # (C, 1) so they broadcast along the flattened-spatial (lane) axis.
    inv1 = gamma1 / jnp.sqrt(var1 + eps)
    inv2 = gamma2 / jnp.sqrt(var2 + eps)
    s1 = inv1.reshape(-1, 1).astype(jnp.float32)
    b1 = (beta1 - mean1 * inv1).reshape(-1, 1).astype(jnp.float32)
    s2 = inv2.reshape(-1, 1).astype(jnp.float32)
    b2 = (beta2 - mean2 * inv2).reshape(-1, 1).astype(jnp.float32)

    B, Cin, H, W = x_nchw.shape
    Cout = w1_oihw.shape[0]
    assert Cin == Cout, "downsample=None requires in_channels == out_channels"
    HW = H * W

    # Channels-first, flattened-spatial layout: contiguous (free) reshape,
    # no transposes and no HBM-side spatial padding.
    xf = x_nchw.reshape(B, Cin, HW)

    # OIHW -> (tap, Cout, Cin) with tap = ky*3 + kx, matching the kernel's
    # (dy, dx) loop order; keep native dtype so bf16 inputs use the bf16 MXU.
    w1t = jnp.transpose(w1_oihw, (2, 3, 0, 1)).reshape(9, Cout, Cin)
    w2t = jnp.transpose(w2_oihw, (2, 3, 0, 1)).reshape(9, Cout, Cout)
    w1t = w1t.astype(x_nchw.dtype)
    w2t = w2t.astype(x_nchw.dtype)

    kernel = functools.partial(residual_block_kernel, H=H, W=W)

    out_flat = pl.pallas_call(
        kernel,
        out_shape=jax.ShapeDtypeStruct((B, Cout, HW), x_nchw.dtype),
        grid=(B,),
        in_specs=[
            pl.BlockSpec((1, Cin, HW), lambda b: (b, 0, 0)),
            pl.BlockSpec((9, Cout, Cin), lambda b: (0, 0, 0)),
            pl.BlockSpec((9, Cout, Cout), lambda b: (0, 0, 0)),
            pl.BlockSpec((Cout, 1), lambda b: (0, 0)),
            pl.BlockSpec((Cout, 1), lambda b: (0, 0)),
            pl.BlockSpec((Cout, 1), lambda b: (0, 0)),
            pl.BlockSpec((Cout, 1), lambda b: (0, 0)),
        ],
        out_specs=pl.BlockSpec((1, Cout, HW), lambda b: (b, 0, 0)),
        scratch_shapes=[
            pltpu.VMEM((Cin, HW + 2 * (W + 1)), x_nchw.dtype),
        ],
        compiler_params=pltpu.CompilerParams(
            dimension_semantics=("parallel",)),
    )(xf, w1t, w2t, s1, b1, s2, b2)

    return out_flat.reshape(B, Cout, H, W)


def residual_block_reference(x, w1, w2, bn1, bn2, eps=1e-5):
    """Plain-JAX reference (NCHW / OIHW, eval-mode BN) for verification."""
    def conv(h, w):
        return jax.lax.conv_general_dilated(
            h, w, window_strides=(1, 1), padding=((1, 1), (1, 1)),
            dimension_numbers=("NCHW", "OIHW", "NCHW"))

    def bn(h, p):
        g, b, m, v = p
        g = g[None, :, None, None]
        b = b[None, :, None, None]
        m = m[None, :, None, None]
        v = v[None, :, None, None]
        return (h - m) / jnp.sqrt(v + eps) * g + b

    out = jax.nn.relu(bn(conv(x, w1), bn1))
    out = bn(conv(out, w2), bn2)
    return jax.nn.relu(out + x)


if __name__ == "__main__":
    B, C, H, W = 2, 4, 16, 16  # in_channels == out_channels == 4, stride = 1

    key = jax.random.PRNGKey(0)
    k_x, k_w1, k_w2, k_g1, k_b1, k_m1, k_v1, k_g2, k_b2, k_m2, k_v2 = (
        jax.random.split(key, 11))

    x = jax.random.normal(k_x, (B, C, H, W), jnp.float32)

    # conv weights in PyTorch OIHW layout (out, in, kh, kw), bias=False
    w1 = 0.1 * jax.random.normal(k_w1, (C, C, 3, 3), jnp.float32)
    w2 = 0.1 * jax.random.normal(k_w2, (C, C, 3, 3), jnp.float32)

    # BatchNorm2d params: (gamma, beta, running_mean, running_var)
    bn1 = (1.0 + 0.1 * jax.random.normal(k_g1, (C,), jnp.float32),
           0.1 * jax.random.normal(k_b1, (C,), jnp.float32),
           0.1 * jax.random.normal(k_m1, (C,), jnp.float32),
           1.0 + 0.1 * jax.random.uniform(k_v1, (C,), jnp.float32))
    bn2 = (1.0 + 0.1 * jax.random.normal(k_g2, (C,), jnp.float32),
           0.1 * jax.random.normal(k_b2, (C,), jnp.float32),
           0.1 * jax.random.normal(k_m2, (C,), jnp.float32),
           1.0 + 0.1 * jax.random.uniform(k_v2, (C,), jnp.float32))

    out = residual_block(x, w1, w2, bn1, bn2)
    out = jax.block_until_ready(out)

    ref = residual_block_reference(x, w1, w2, bn1, bn2)
    assert out.shape == (B, C, H, W)
    assert jnp.allclose(out, ref, atol=1e-4, rtol=1e-4), (
        "mismatch vs reference: max abs err = "
        f"{float(jnp.max(jnp.abs(out - ref)))}")

    print("KERNEL_OK")
</pallas_src>

<mosaic_0001>
module attributes {stable_mosaic.version = 11 : i64} {
  func.func @residual_block_kernel(%arg0: i32, %arg1: memref<1x4x256xf32, #tpu.memory_space<vmem>>, %arg2: memref<9x4x4xf32, #tpu.memory_space<vmem>>, %arg3: memref<9x4x4xf32, #tpu.memory_space<vmem>>, %arg4: memref<4x1xf32, #tpu.memory_space<vmem>>, %arg5: memref<4x1xf32, #tpu.memory_space<vmem>>, %arg6: memref<4x1xf32, #tpu.memory_space<vmem>>, %arg7: memref<4x1xf32, #tpu.memory_space<vmem>>, %arg8: memref<1x4x256xf32, #tpu.memory_space<vmem>>, %arg9: memref<4x290xf32, #tpu.memory_space<vmem>>) attributes {dimension_semantics = [#tpu.dimension_semantics<parallel>], iteration_bounds = array<i64: 2>, scalar_prefetch = 0 : i64, scratch_operands = 1 : i64, tpu.core_type = #tpu.core_type<tc>, window_params = [{transform_indices = @transform_0, window_bounds = array<i64: 1, 4, 256>}, {pipeline_mode = #tpu.pipeline_mode<synchronous>, transform_indices = @transform_1, window_bounds = array<i64: 9, 4, 4>}, {pipeline_mode = #tpu.pipeline_mode<synchronous>, transform_indices = @transform_2, window_bounds = array<i64: 9, 4, 4>}, {pipeline_mode = #tpu.pipeline_mode<synchronous>, transform_indices = @transform_3, window_bounds = array<i64: 4, 1>}, {pipeline_mode = #tpu.pipeline_mode<synchronous>, transform_indices = @transform_4, window_bounds = array<i64: 4, 1>}, {pipeline_mode = #tpu.pipeline_mode<synchronous>, transform_indices = @transform_5, window_bounds = array<i64: 4, 1>}, {pipeline_mode = #tpu.pipeline_mode<synchronous>, transform_indices = @transform_6, window_bounds = array<i64: 4, 1>}, {transform_indices = @transform_7, window_bounds = array<i64: 1, 4, 256>}]} {
    %0 = tpu.iota {dimensions = array<i32: 1>} : vector<1x256xi32>
    %c16_i32 = arith.constant 16 : i32
    %c0_i32 = arith.constant 0 : i32
    %1 = arith.cmpi eq, %c16_i32, %c0_i32 : i32
    %c1_i32 = arith.constant 1 : i32
    %2 = arith.select %1, %c1_i32, %c16_i32 : i32
    %3 = vector.broadcast %2 : i32 to vector<1x256xi32>
    %4 = arith.remsi %0, %3 : vector<1x256xi32>
    %c0_i32_0 = arith.constant 0 : i32
    %5 = vector.broadcast %c0_i32_0 : i32 to vector<1x256xi32>
    %6 = arith.cmpi ne, %4, %5 : vector<1x256xi32>
    %c0_i32_1 = arith.constant 0 : i32
    %7 = vector.broadcast %c0_i32_1 : i32 to vector<1x256xi32>
    %8 = arith.cmpi slt, %4, %7 : vector<1x256xi32>
    %c0_i32_2 = arith.constant 0 : i32
    %9 = arith.cmpi slt, %2, %c0_i32_2 : i32
    %10 = vector.broadcast %9 : i1 to vector<1x256xi1>
    %11 = vector.broadcast %10 : vector<1x256xi1> to vector<1x256xi1>
    %12 = arith.xori %8, %11 : vector<1x256xi1>
    %13 = arith.andi %12, %6 : vector<1x256xi1>
    %14 = vector.broadcast %2 : i32 to vector<1x256xi32>
    %15 = arith.addi %4, %14 : vector<1x256xi32>
    %16 = arith.select %13, %15, %4 : vector<1x256xi1>, vector<1x256xi32>
    %c0_i32_3 = arith.constant 0 : i32
    %17 = vector.broadcast %c0_i32_3 : i32 to vector<1x256xi32>
    %18 = arith.cmpi ne, %16, %17 : vector<1x256xi32>
    %c15_i32 = arith.constant 15 : i32
    %19 = vector.broadcast %c15_i32 : i32 to vector<1x256xi32>
    %20 = arith.cmpi ne, %16, %19 : vector<1x256xi32>
    %cst = arith.constant 0.000000e+00 : f32
    %21 = vector.broadcast %cst : f32 to vector<4x17xf32>
    %c0 = arith.constant 0 : index
    %c0_4 = arith.constant 0 : index
    %22 = vector.load %arg9[%c0, %c0_4] : memref<4x290xf32, #tpu.memory_space<vmem>>, vector<4x17xf32>
    tpu.vector_store %arg9[%c0, %c0_4], %21 {strides = array<i32>} : memref<4x290xf32, #tpu.memory_space<vmem>>, vector<4x17xf32>,
    %c0_5 = arith.constant 0 : index
    %c273 = arith.constant 273 : index
    %23 = vector.load %arg9[%c0_5, %c273] : memref<4x290xf32, #tpu.memory_space<vmem>>, vector<4x17xf32>
    tpu.vector_store %arg9[%c0_5, %c273], %21 {strides = array<i32>} : memref<4x290xf32, #tpu.memory_space<vmem>>, vector<4x17xf32>,
    %c0_6 = arith.constant 0 : index
    %c0_7 = arith.constant 0 : index
    %c0_8 = arith.constant 0 : index
    %24 = vector.load %arg1[%c0_6, %c0_7, %c0_8] : memref<1x4x256xf32, #tpu.memory_space<vmem>>, vector<1x4x256xf32>
    %25 = vector.shape_cast %24 : vector<1x4x256xf32> to vector<4x256xf32>
    %c0_9 = arith.constant 0 : index
    %c17 = arith.constant 17 : index
    %26 = vector.load %arg9[%c0_9, %c17] : memref<4x290xf32, #tpu.memory_space<vmem>>, vector<4x256xf32>
    tpu.vector_store %arg9[%c0_9, %c17], %25 {strides = array<i32>} : memref<4x290xf32, #tpu.memory_space<vmem>>, vector<4x256xf32>,
    %cst_10 = arith.constant 0.000000e+00 : f32
    %27 = vector.broadcast %cst_10 : f32 to vector<4x256xf32>
    %c0_11 = arith.constant 0 : index
    %c0_12 = arith.constant 0 : index
    %28 = vector.load %arg9[%c0_11, %c0_12] : memref<4x290xf32, #tpu.memory_space<vmem>>, vector<4x256xf32>
    %cst_13 = arith.constant 0.000000e+00 : f32
    %29 = vector.broadcast %cst_13 : f32 to vector<4x256xf32>
    %30 = vector.shape_cast %18 : vector<1x256xi1> to vector<1x256xi1>
    %31 = vector.broadcast %30 : vector<1x256xi1> to vector<4x256xi1>
    %32 = arith.select %31, %28, %29 : vector<4x256xi1>, vector<4x256xf32>
    %c0_14 = arith.constant 0 : index
    %c0_15 = arith.constant 0 : index
    %c0_16 = arith.constant 0 : index
    %33 = vector.load %arg2[%c0_14, %c0_15, %c0_16] : memref<9x4x4xf32, #tpu.memory_space<vmem>>, vector<1x4x4xf32>
    %34 = vector.shape_cast %33 : vector<1x4x4xf32> to vector<4x4xf32>
    %cst_17 = arith.constant dense<0.000000e+00> : vector<4x256xf32>
    %35 = tpu.matmul %34, %32, %cst_17 {dimension_numbers = #tpu.dot_dimension_numbers<[1], [0], [0], [1], [0, 0, 1, 1], [], []>} : vector<4x4xf32>, vector<4x256xf32>, vector<4x256xf32> -> vector<4x256xf32>
    %36 = arith.addf %27, %35 : vector<4x256xf32>
    %c0_18 = arith.constant 0 : index
    %c1 = arith.constant 1 : index
    %37 = vector.load %arg9[%c0_18, %c1] : memref<4x290xf32, #tpu.memory_space<vmem>>, vector<4x256xf32>
    %c1_19 = arith.constant 1 : index
    %c0_20 = arith.constant 0 : index
    %c0_21 = arith.constant 0 : index
    %38 = vector.load %arg2[%c1_19, %c0_20, %c0_21] : memref<9x4x4xf32, #tpu.memory_space<vmem>>, vector<1x4x4xf32>
    %39 = vector.shape_cast %38 : vector<1x4x4xf32> to vector<4x4xf32>
    %cst_22 = arith.constant dense<0.000000e+00> : vector<4x256xf32>
    %40 = tpu.matmul %39, %37, %cst_22 {dimension_numbers = #tpu.dot_dimension_numbers<[1], [0], [0], [1], [0, 0, 1, 1], [], []>} : vector<4x4xf32>, vector<4x256xf32>, vector<4x256xf32> -> vector<4x256xf32>
    %41 = arith.addf %36, %40 : vector<4x256xf32>
    %c0_23 = arith.constant 0 : index
    %c2 = arith.constant 2 : index
    %42 = vector.load %arg9[%c0_23, %c2] : memref<4x290xf32, #tpu.memory_space<vmem>>, vector<4x256xf32>
    %cst_24 = arith.constant 0.000000e+00 : f32
    %43 = vector.broadcast %cst_24 : f32 to vector<4x256xf32>
    %44 = vector.shape_cast %20 : vector<1x256xi1> to vector<1x256xi1>
    %45 = vector.broadcast %44 : vector<1x256xi1> to vector<4x256xi1>
    %46 = arith.select %45, %42, %43 : vector<4x256xi1>, vector<4x256xf32>
    %c2_25 = arith.constant 2 : index
    %c0_26 = arith.constant 0 : index
    %c0_27 = arith.constant 0 : index
    %47 = vector.load %arg2[%c2_25, %c0_26, %c0_27] : memref<9x4x4xf32, #tpu.memory_space<vmem>>, vector<1x4x4xf32>
    %48 = vector.shape_cast %47 : vector<1x4x4xf32> to vector<4x4xf32>
    %cst_28 = arith.constant dense<0.000000e+00> : vector<4x256xf32>
    %49 = tpu.matmul %48, %46, %cst_28 {dimension_numbers = #tpu.dot_dimension_numbers<[1], [0], [0], [1], [0, 0, 1, 1], [], []>} : vector<4x4xf32>, vector<4x256xf32>, vector<4x256xf32> -> vector<4x256xf32>
    %50 = arith.addf %41, %49 : vector<4x256xf32>
    %c0_29 = arith.constant 0 : index
    %c16 = arith.constant 16 : index
    %51 = vector.load %arg9[%c0_29, %c16] : memref<4x290xf32, #tpu.memory_space<vmem>>, vector<4x256xf32>
    %cst_30 = arith.constant 0.000000e+00 : f32
    %52 = vector.broadcast %cst_30 : f32 to vector<4x256xf32>
    %53 = vector.shape_cast %18 : vector<1x256xi1> to vector<1x256xi1>
    %54 = vector.broadcast %53 : vector<1x256xi1> to vector<4x256xi1>
    %55 = arith.select %54, %51, %52 : vector<4x256xi1>, vector<4x256xf32>
    %c3 = arith.constant 3 : index
    %c0_31 = arith.constant 0 : index
    %c0_32 = arith.constant 0 : index
    %56 = vector.load %arg2[%c3, %c0_31, %c0_32] : memref<9x4x4xf32, #tpu.memory_space<vmem>>, vector<1x4x4xf32>
    %57 = vector.shape_cast %56 : vector<1x4x4xf32> to vector<4x4xf32>
    %cst_33 = arith.constant dense<0.000000e+00> : vector<4x256xf32>
    %58 = tpu.matmul %57, %55, %cst_33 {dimension_numbers = #tpu.dot_dimension_numbers<[1], [0], [0], [1], [0, 0, 1, 1], [], []>} : vector<4x4xf32>, vector<4x256xf32>, vector<4x256xf32> -> vector<4x256xf32>
    %59 = arith.addf %50, %58 : vector<4x256xf32>
    %c0_34 = arith.constant 0 : index
    %c17_35 = arith.constant 17 : index
    %60 = vector.load %arg9[%c0_34, %c17_35] : memref<4x290xf32, #tpu.memory_space<vmem>>, vector<4x256xf32>
    %c4 = arith.constant 4 : index
    %c0_36 = arith.constant 0 : index
    %c0_37 = arith.constant 0 : index
    %61 = vector.load %arg2[%c4, %c0_36, %c0_37] : memref<9x4x4xf32, #tpu.memory_space<vmem>>, vector<1x4x4xf32>
    %62 = vector.shape_cast %61 : vector<1x4x4xf32> to vector<4x4xf32>
    %cst_38 = arith.constant dense<0.000000e+00> : vector<4x256xf32>
    %63 = tpu.matmul %62, %60, %cst_38 {dimension_numbers = #tpu.dot_dimension_numbers<[1], [0], [0], [1], [0, 0, 1, 1], [], []>} : vector<4x4xf32>, vector<4x256xf32>, vector<4x256xf32> -> vector<4x256xf32>
    %64 = arith.addf %59, %63 : vector<4x256xf32>
    %c0_39 = arith.constant 0 : index
    %c18 = arith.constant 18 : index
    %65 = vector.load %arg9[%c0_39, %c18] : memref<4x290xf32, #tpu.memory_space<vmem>>, vector<4x256xf32>
    %cst_40 = arith.constant 0.000000e+00 : f32
    %66 = vector.broadcast %cst_40 : f32 to vector<4x256xf32>
    %67 = vector.shape_cast %20 : vector<1x256xi1> to vector<1x256xi1>
    %68 = vector.broadcast %67 : vector<1x256xi1> to vector<4x256xi1>
    %69 = arith.select %68, %65, %66 : vector<4x256xi1>, vector<4x256xf32>
    %c5 = arith.constant 5 : index
    %c0_41 = arith.constant 0 : index
    %c0_42 = arith.constant 0 : index
    %70 = vector.load %arg2[%c5, %c0_41, %c0_42] : memref<9x4x4xf32, #tpu.memory_space<vmem>>, vector<1x4x4xf32>
    %71 = vector.shape_cast %70 : vector<1x4x4xf32> to vector<4x4xf32>
    %cst_43 = arith.constant dense<0.000000e+00> : vector<4x256xf32>
    %72 = tpu.matmul %71, %69, %cst_43 {dimension_numbers = #tpu.dot_dimension_numbers<[1], [0], [0], [1], [0, 0, 1, 1], [], []>} : vector<4x4xf32>, vector<4x256xf32>, vector<4x256xf32> -> vector<4x256xf32>
    %73 = arith.addf %64, %72 : vector<4x256xf32>
    %c0_44 = arith.constant 0 : index
    %c32 = arith.constant 32 : index
    %74 = vector.load %arg9[%c0_44, %c32] : memref<4x290xf32, #tpu.memory_space<vmem>>, vector<4x256xf32>
    %cst_45 = arith.constant 0.000000e+00 : f32
    %75 = vector.broadcast %cst_45 : f32 to vector<4x256xf32>
    %76 = vector.shape_cast %18 : vector<1x256xi1> to vector<1x256xi1>
    %77 = vector.broadcast %76 : vector<1x256xi1> to vector<4x256xi1>
    %78 = arith.select %77, %74, %75 : vector<4x256xi1>, vector<4x256xf32>
    %c6 = arith.constant 6 : index
    %c0_46 = arith.constant 0 : index
    %c0_47 = arith.constant 0 : index
    %79 = vector.load %arg2[%c6, %c0_46, %c0_47] : memref<9x4x4xf32, #tpu.memory_space<vmem>>, vector<1x4x4xf32>
    %80 = vector.shape_cast %79 : vector<1x4x4xf32> to vector<4x4xf32>
    %cst_48 = arith.constant dense<0.000000e+00> : vector<4x256xf32>
    %81 = tpu.matmul %80, %78, %cst_48 {dimension_numbers = #tpu.dot_dimension_numbers<[1], [0], [0], [1], [0, 0, 1, 1], [], []>} : vector<4x4xf32>, vector<4x256xf32>, vector<4x256xf32> -> vector<4x256xf32>
    %82 = arith.addf %73, %81 : vector<4x256xf32>
    %c0_49 = arith.constant 0 : index
    %c33 = arith.constant 33 : index
    %83 = vector.load %arg9[%c0_49, %c33] : memref<4x290xf32, #tpu.memory_space<vmem>>, vector<4x256xf32>
    %c7 = arith.constant 7 : index
    %c0_50 = arith.constant 0 : index
    %c0_51 = arith.constant 0 : index
    %84 = vector.load %arg2[%c7, %c0_50, %c0_51] : memref<9x4x4xf32, #tpu.memory_space<vmem>>, vector<1x4x4xf32>
    %85 = vector.shape_cast %84 : vector<1x4x4xf32> to vector<4x4xf32>
    %cst_52 = arith.constant dense<0.000000e+00> : vector<4x256xf32>
    %86 = tpu.matmul %85, %83, %cst_52 {dimension_numbers = #tpu.dot_dimension_numbers<[1], [0], [0], [1], [0, 0, 1, 1], [], []>} : vector<4x4xf32>, vector<4x256xf32>, vector<4x256xf32> -> vector<4x256xf32>
    %87 = arith.addf %82, %86 : vector<4x256xf32>
    %c0_53 = arith.constant 0 : index
    %c34 = arith.constant 34 : index
    %88 = vector.load %arg9[%c0_53, %c34] : memref<4x290xf32, #tpu.memory_space<vmem>>, vector<4x256xf32>
    %cst_54 = arith.constant 0.000000e+00 : f32
    %89 = vector.broadcast %cst_54 : f32 to vector<4x256xf32>
    %90 = vector.shape_cast %20 : vector<1x256xi1> to vector<1x256xi1>
    %91 = vector.broadcast %90 : vector<1x256xi1> to vector<4x256xi1>
    %92 = arith.select %91, %88, %89 : vector<4x256xi1>, vector<4x256xf32>
    %c8 = arith.constant 8 : index
    %c0_55 = arith.constant 0 : index
    %c0_56 = arith.constant 0 : index
    %93 = vector.load %arg2[%c8, %c0_55, %c0_56] : memref<9x4x4xf32, #tpu.memory_space<vmem>>, vector<1x4x4xf32>
    %94 = vector.shape_cast %93 : vector<1x4x4xf32> to vector<4x4xf32>
    %cst_57 = arith.constant dense<0.000000e+00> : vector<4x256xf32>
    %95 = tpu.matmul %94, %92, %cst_57 {dimension_numbers = #tpu.dot_dimension_numbers<[1], [0], [0], [1], [0, 0, 1, 1], [], []>} : vector<4x4xf32>, vector<4x256xf32>, vector<4x256xf32> -> vector<4x256xf32>
    %96 = arith.addf %87, %95 : vector<4x256xf32>
    %c0_58 = arith.constant 0 : index
    %c0_59 = arith.constant 0 : index
    %97 = vector.load %arg4[%c0_58, %c0_59] : memref<4x1xf32, #tpu.memory_space<vmem>>, vector<4x1xf32>
    %98 = vector.broadcast %97 : vector<4x1xf32> to vector<4x256xf32>
    %99 = arith.mulf %96, %98 : vector<4x256xf32>
    %c0_60 = arith.constant 0 : index
    %c0_61 = arith.constant 0 : index
    %100 = vector.load %arg5[%c0_60, %c0_61] : memref<4x1xf32, #tpu.memory_space<vmem>>, vector<4x1xf32>
    %101 = vector.broadcast %100 : vector<4x1xf32> to vector<4x256xf32>
    %102 = arith.addf %99, %101 : vector<4x256xf32>
    %cst_62 = arith.constant 0.000000e+00 : f32
    %103 = vector.broadcast %cst_62 : f32 to vector<4x256xf32>
    %104 = arith.maximumf %102, %103 : vector<4x256xf32>
    %c0_63 = arith.constant 0 : index
    %c17_64 = arith.constant 17 : index
    %105 = vector.load %arg9[%c0_63, %c17_64] : memref<4x290xf32, #tpu.memory_space<vmem>>, vector<4x256xf32>
    tpu.vector_store %arg9[%c0_63, %c17_64], %104 {strides = array<i32>} : memref<4x290xf32, #tpu.memory_space<vmem>>, vector<4x256xf32>,
    %cst_65 = arith.constant 0.000000e+00 : f32
    %106 = vector.broadcast %cst_65 : f32 to vector<4x256xf32>
    %c0_66 = arith.constant 0 : index
    %c0_67 = arith.constant 0 : index
    %107 = vector.load %arg9[%c0_66, %c0_67] : memref<4x290xf32, #tpu.memory_space<vmem>>, vector<4x256xf32>
    %cst_68 = arith.constant 0.000000e+00 : f32
    %108 = vector.broadcast %cst_68 : f32 to vector<4x256xf32>
    %109 = vector.shape_cast %18 : vector<1x256xi1> to vector<1x256xi1>
    %110 = vector.broadcast %109 : vector<1x256xi1> to vector<4x256xi1>
    %111 = arith.select %110, %107, %108 : vector<4x256xi1>, vector<4x256xf32>
    %c0_69 = arith.constant 0 : index
    %c0_70 = arith.constant 0 : index
    %c0_71 = arith.constant 0 : index
    %112 = vector.load %arg3[%c0_69, %c0_70, %c0_71] : memref<9x4x4xf32, #tpu.memory_space<vmem>>, vector<1x4x4xf32>
    %113 = vector.shape_cast %112 : vector<1x4x4xf32> to vector<4x4xf32>
    %cst_72 = arith.constant dense<0.000000e+00> : vector<4x256xf32>
    %114 = tpu.matmul %113, %111, %cst_72 {dimension_numbers = #tpu.dot_dimension_numbers<[1], [0], [0], [1], [0, 0, 1, 1], [], []>} : vector<4x4xf32>, vector<4x256xf32>, vector<4x256xf32> -> vector<4x256xf32>
    %115 = arith.addf %106, %114 : vector<4x256xf32>
    %c0_73 = arith.constant 0 : index
    %c1_74 = arith.constant 1 : index
    %116 = vector.load %arg9[%c0_73, %c1_74] : memref<4x290xf32, #tpu.memory_space<vmem>>, vector<4x256xf32>
    %c1_75 = arith.constant 1 : index
    %c0_76 = arith.constant 0 : index
    %c0_77 = arith.constant 0 : index
    %117 = vector.load %arg3[%c1_75, %c0_76, %c0_77] : memref<9x4x4xf32, #tpu.memory_space<vmem>>, vector<1x4x4xf32>
    %118 = vector.shape_cast %117 : vector<1x4x4xf32> to vector<4x4xf32>
    %cst_78 = arith.constant dense<0.000000e+00> : vector<4x256xf32>
    %119 = tpu.matmul %118, %116, %cst_78 {dimension_numbers = #tpu.dot_dimension_numbers<[1], [0], [0], [1], [0, 0, 1, 1], [], []>} : vector<4x4xf32>, vector<4x256xf32>, vector<4x256xf32> -> vector<4x256xf32>
    %120 = arith.addf %115, %119 : vector<4x256xf32>
    %c0_79 = arith.constant 0 : index
    %c2_80 = arith.constant 2 : index
    %121 = vector.load %arg9[%c0_79, %c2_80] : memref<4x290xf32, #tpu.memory_space<vmem>>, vector<4x256xf32>
    %cst_81 = arith.constant 0.000000e+00 : f32
    %122 = vector.broadcast %cst_81 : f32 to vector<4x256xf32>
    %123 = vector.shape_cast %20 : vector<1x256xi1> to vector<1x256xi1>
    %124 = vector.broadcast %123 : vector<1x256xi1> to vector<4x256xi1>
    %125 = arith.select %124, %121, %122 : vector<4x256xi1>, vector<4x256xf32>
    %c2_82 = arith.constant 2 : index
    %c0_83 = arith.constant 0 : index
    %c0_84 = arith.constant 0 : index
    %126 = vector.load %arg3[%c2_82, %c0_83, %c0_84] : memref<9x4x4xf32, #tpu.memory_space<vmem>>, vector<1x4x4xf32>
    %127 = vector.shape_cast %126 : vector<1x4x4xf32> to vector<4x4xf32>
    %cst_85 = arith.constant dense<0.000000e+00> : vector<4x256xf32>
    %128 = tpu.matmul %127, %125, %cst_85 {dimension_numbers = #tpu.dot_dimension_numbers<[1], [0], [0], [1], [0, 0, 1, 1], [], []>} : vector<4x4xf32>, vector<4x256xf32>, vector<4x256xf32> -> vector<4x256xf32>
    %129 = arith.addf %120, %128 : vector<4x256xf32>
    %c0_86 = arith.constant 0 : index
    %c16_87 = arith.constant 16 : index
    %130 = vector.load %arg9[%c0_86, %c16_87] : memref<4x290xf32, #tpu.memory_space<vmem>>, vector<4x256xf32>
    %cst_88 = arith.constant 0.000000e+00 : f32
    %131 = vector.broadcast %cst_88 : f32 to vector<4x256xf32>
    %132 = vector.shape_cast %18 : vector<1x256xi1> to vector<1x256xi1>
    %133 = vector.broadcast %132 : vector<1x256xi1> to vector<4x256xi1>
    %134 = arith.select %133, %130, %131 : vector<4x256xi1>, vector<4x256xf32>
    %c3_89 = arith.constant 3 : index
    %c0_90 = arith.constant 0 : index
    %c0_91 = arith.constant 0 : index
    %135 = vector.load %arg3[%c3_89, %c0_90, %c0_91] : memref<9x4x4xf32, #tpu.memory_space<vmem>>, vector<1x4x4xf32>
    %136 = vector.shape_cast %135 : vector<1x4x4xf32> to vector<4x4xf32>
    %cst_92 = arith.constant dense<0.000000e+00> : vector<4x256xf32>
    %137 = tpu.matmul %136, %134, %cst_92 {dimension_numbers = #tpu.dot_dimension_numbers<[1], [0], [0], [1], [0, 0, 1, 1], [], []>} : vector<4x4xf32>, vector<4x256xf32>, vector<4x256xf32> -> vector<4x256xf32>
    %138 = arith.addf %129, %137 : vector<4x256xf32>
    %c0_93 = arith.constant 0 : index
    %c17_94 = arith.constant 17 : index
    %139 = vector.load %arg9[%c0_93, %c17_94] : memref<4x290xf32, #tpu.memory_space<vmem>>, vector<4x256xf32>
    %c4_95 = arith.constant 4 : index
    %c0_96 = arith.constant 0 : index
    %c0_97 = arith.constant 0 : index
    %140 = vector.load %arg3[%c4_95, %c0_96, %c0_97] : memref<9x4x4xf32, #tpu.memory_space<vmem>>, vector<1x4x4xf32>
    %141 = vector.shape_cast %140 : vector<1x4x4xf32> to vector<4x4xf32>
    %cst_98 = arith.constant dense<0.000000e+00> : vector<4x256xf32>
    %142 = tpu.matmul %141, %139, %cst_98 {dimension_numbers = #tpu.dot_dimension_numbers<[1], [0], [0], [1], [0, 0, 1, 1], [], []>} : vector<4x4xf32>, vector<4x256xf32>, vector<4x256xf32> -> vector<4x256xf32>
    %143 = arith.addf %138, %142 : vector<4x256xf32>
    %c0_99 = arith.constant 0 : index
    %c18_100 = arith.constant 18 : index
    %144 = vector.load %arg9[%c0_99, %c18_100] : memref<4x290xf32, #tpu.memory_space<vmem>>, vector<4x256xf32>
    %cst_101 = arith.constant 0.000000e+00 : f32
    %145 = vector.broadcast %cst_101 : f32 to vector<4x256xf32>
    %146 = vector.shape_cast %20 : vector<1x256xi1> to vector<1x256xi1>
    %147 = vector.broadcast %146 : vector<1x256xi1> to vector<4x256xi1>
    %148 = arith.select %147, %144, %145 : vector<4x256xi1>, vector<4x256xf32>
    %c5_102 = arith.constant 5 : index
    %c0_103 = arith.constant 0 : index
    %c0_104 = arith.constant 0 : index
    %149 = vector.load %arg3[%c5_102, %c0_103, %c0_104] : memref<9x4x4xf32, #tpu.memory_space<vmem>>, vector<1x4x4xf32>
    %150 = vector.shape_cast %149 : vector<1x4x4xf32> to vector<4x4xf32>
    %cst_105 = arith.constant dense<0.000000e+00> : vector<4x256xf32>
    %151 = tpu.matmul %150, %148, %cst_105 {dimension_numbers = #tpu.dot_dimension_numbers<[1], [0], [0], [1], [0, 0, 1, 1], [], []>} : vector<4x4xf32>, vector<4x256xf32>, vector<4x256xf32> -> vector<4x256xf32>
    %152 = arith.addf %143, %151 : vector<4x256xf32>
    %c0_106 = arith.constant 0 : index
    %c32_107 = arith.constant 32 : index
    %153 = vector.load %arg9[%c0_106, %c32_107] : memref<4x290xf32, #tpu.memory_space<vmem>>, vector<4x256xf32>
    %cst_108 = arith.constant 0.000000e+00 : f32
    %154 = vector.broadcast %cst_108 : f32 to vector<4x256xf32>
    %155 = vector.shape_cast %18 : vector<1x256xi1> to vector<1x256xi1>
    %156 = vector.broadcast %155 : vector<1x256xi1> to vector<4x256xi1>
    %157 = arith.select %156, %153, %154 : vector<4x256xi1>, vector<4x256xf32>
    %c6_109 = arith.constant 6 : index
    %c0_110 = arith.constant 0 : index
    %c0_111 = arith.constant 0 : index
    %158 = vector.load %arg3[%c6_109, %c0_110, %c0_111] : memref<9x4x4xf32, #tpu.memory_space<vmem>>, vector<1x4x4xf32>
    %159 = vector.shape_cast %158 : vector<1x4x4xf32> to vector<4x4xf32>
    %cst_112 = arith.constant dense<0.000000e+00> : vector<4x256xf32>
    %160 = tpu.matmul %159, %157, %cst_112 {dimension_numbers = #tpu.dot_dimension_numbers<[1], [0], [0], [1], [0, 0, 1, 1], [], []>} : vector<4x4xf32>, vector<4x256xf32>, vector<4x256xf32> -> vector<4x256xf32>
    %161 = arith.addf %152, %160 : vector<4x256xf32>
    %c0_113 = arith.constant 0 : index
    %c33_114 = arith.constant 33 : index
    %162 = vector.load %arg9[%c0_113, %c33_114] : memref<4x290xf32, #tpu.memory_space<vmem>>, vector<4x256xf32>
    %c7_115 = arith.constant 7 : index
    %c0_116 = arith.constant 0 : index
    %c0_117 = arith.constant 0 : index
    %163 = vector.load %arg3[%c7_115, %c0_116, %c0_117] : memref<9x4x4xf32, #tpu.memory_space<vmem>>, vector<1x4x4xf32>
    %164 = vector.shape_cast %163 : vector<1x4x4xf32> to vector<4x4xf32>
    %cst_118 = arith.constant dense<0.000000e+00> : vector<4x256xf32>
    %165 = tpu.matmul %164, %162, %cst_118 {dimension_numbers = #tpu.dot_dimension_numbers<[1], [0], [0], [1], [0, 0, 1, 1], [], []>} : vector<4x4xf32>, vector<4x256xf32>, vector<4x256xf32> -> vector<4x256xf32>
    %166 = arith.addf %161, %165 : vector<4x256xf32>
    %c0_119 = arith.constant 0 : index
    %c34_120 = arith.constant 34 : index
    %167 = vector.load %arg9[%c0_119, %c34_120] : memref<4x290xf32, #tpu.memory_space<vmem>>, vector<4x256xf32>
    %cst_121 = arith.constant 0.000000e+00 : f32
    %168 = vector.broadcast %cst_121 : f32 to vector<4x256xf32>
    %169 = vector.shape_cast %20 : vector<1x256xi1> to vector<1x256xi1>
    %170 = vector.broadcast %169 : vector<1x256xi1> to vector<4x256xi1>
    %171 = arith.select %170, %167, %168 : vector<4x256xi1>, vector<4x256xf32>
    %c8_122 = arith.constant 8 : index
    %c0_123 = arith.constant 0 : index
    %c0_124 = arith.constant 0 : index
    %172 = vector.load %arg3[%c8_122, %c0_123, %c0_124] : memref<9x4x4xf32, #tpu.memory_space<vmem>>, vector<1x4x4xf32>
    %173 = vector.shape_cast %172 : vector<1x4x4xf32> to vector<4x4xf32>
    %cst_125 = arith.constant dense<0.000000e+00> : vector<4x256xf32>
    %174 = tpu.matmul %173, %171, %cst_125 {dimension_numbers = #tpu.dot_dimension_numbers<[1], [0], [0], [1], [0, 0, 1, 1], [], []>} : vector<4x4xf32>, vector<4x256xf32>, vector<4x256xf32> -> vector<4x256xf32>
    %175 = arith.addf %166, %174 : vector<4x256xf32>
    %c0_126 = arith.constant 0 : index
    %c0_127 = arith.constant 0 : index
    %176 = vector.load %arg6[%c0_126, %c0_127] : memref<4x1xf32, #tpu.memory_space<vmem>>, vector<4x1xf32>
    %177 = vector.broadcast %176 : vector<4x1xf32> to vector<4x256xf32>
    %178 = arith.mulf %175, %177 : vector<4x256xf32>
    %c0_128 = arith.constant 0 : index
    %c0_129 = arith.constant 0 : index
    %179 = vector.load %arg7[%c0_128, %c0_129] : memref<4x1xf32, #tpu.memory_space<vmem>>, vector<4x1xf32>
    %180 = vector.broadcast %179 : vector<4x1xf32> to vector<4x256xf32>
    %181 = arith.addf %178, %180 : vector<4x256xf32>
    %182 = arith.addf %181, %25 : vector<4x256xf32>
    %cst_130 = arith.constant 0.000000e+00 : f32
    %183 = vector.broadcast %cst_130 : f32 to vector<4x256xf32>
    %184 = arith.maximumf %182, %183 : vector<4x256xf32>
    %c0_131 = arith.constant 0 : index
    %c0_132 = arith.constant 0 : index
    %c0_133 = arith.constant 0 : index
    %185 = vector.load %arg8[%c0_131, %c0_132, %c0_133] : memref<1x4x256xf32, #tpu.memory_space<vmem>>, vector<1x4x256xf32>
    %186 = vector.shape_cast %185 : vector<1x4x256xf32> to vector<4x256xf32>
    %187 = vector.shape_cast %184 : vector<4x256xf32> to vector<1x4x256xf32>
    tpu.vector_store %arg8[%c0_131, %c0_132, %c0_133], %187 {strides = array<i32>} : memref<1x4x256xf32, #tpu.memory_space<vmem>>, vector<1x4x256xf32>,
    return
  }
  func.func @transform_0(%arg0: i32) -> (i32, i32, i32) {
    %c0_i32 = arith.constant 0 : i32
    %c0_i32_0 = arith.constant 0 : i32
    %c0_i32_1 = arith.constant 0 : i32
    return %arg0, %c0_i32, %c0_i32_0 : i32, i32, i32
  }
  func.func @transform_1(%arg0: i32) -> (i32, i32, i32) {
    %c0_i32 = arith.constant 0 : i32
    %c0_i32_0 = arith.constant 0 : i32
    %c0_i32_1 = arith.constant 0 : i32
    %c0_i32_2 = arith.constant 0 : i32
    return %c0_i32, %c0_i32_0, %c0_i32_1 : i32, i32, i32
  }
  func.func @transform_2(%arg0: i32) -> (i32, i32, i32) {
    %c0_i32 = arith.constant 0 : i32
    %c0_i32_0 = arith.constant 0 : i32
    %c0_i32_1 = arith.constant 0 : i32
    %c0_i32_2 = arith.constant 0 : i32
    return %c0_i32, %c0_i32_0, %c0_i32_1 : i32, i32, i32
  }
  func.func @transform_3(%arg0: i32) -> (i32, i32) {
    %c0_i32 = arith.constant 0 : i32
    %c0_i32_0 = arith.constant 0 : i32
    %c0_i32_1 = arith.constant 0 : i32
    return %c0_i32, %c0_i32_0 : i32, i32
  }
  func.func @transform_4(%arg0: i32) -> (i32, i32) {
    %c0_i32 = arith.constant 0 : i32
    %c0_i32_0 = arith.constant 0 : i32
    %c0_i32_1 = arith.constant 0 : i32
    return %c0_i32, %c0_i32_0 : i32, i32
  }
  func.func @transform_5(%arg0: i32) -> (i32, i32) {
    %c0_i32 = arith.constant 0 : i32
    %c0_i32_0 = arith.constant 0 : i32
    %c0_i32_1 = arith.constant 0 : i32
    return %c0_i32, %c0_i32_0 : i32, i32
  }
  func.func @transform_6(%arg0: i32) -> (i32, i32) {
    %c0_i32 = arith.constant 0 : i32
    %c0_i32_0 = arith.constant 0 : i32
    %c0_i32_1 = arith.constant 0 : i32
    return %c0_i32, %c0_i32_0 : i32, i32
  }
  func.func @transform_7(%arg0: i32) -> (i32, i32, i32) {
    %c0_i32 = arith.constant 0 : i32
    %c0_i32_0 = arith.constant 0 : i32
    %c0_i32_1 = arith.constant 0 : i32
    return %arg0, %c0_i32, %c0_i32_0 : i32, i32, i32
  }
}

</mosaic_0001>

<llo_original>
// kernel: tpu_custom_call.1
$region0: #{tpu_custom_call.1}
  #allocation0 [shape = 'u32[]', space=smem, size = 0x4, offset = 0x4, fixed_abs, tag = 'smem constant byte address 0x4 - core index']
  #allocation1 [shape = 'u32[144,128]{1,0:T(1,128)}', space=vmem, size = 0x12000, scoped, tag = 'internal scratch']
  #allocation2 [shape = 'f32[4,290]{1,0:T(4,128)}', space=vmem, size = 0x1800, scoped, tag = 'scratch operand']
  %s0 = inlined_call_operand.vmem [shape: f32[2,4,256], index: 0, kind: input, shape index: {}]
  %s1 = inlined_call_operand.vmem [shape: f32[9,4,4], index: 1, kind: input, shape index: {}]
  %s2 = inlined_call_operand.vmem [shape: f32[9,4,4], index: 2, kind: input, shape index: {}]
  %s3 = inlined_call_operand.vmem [shape: f32[4,1], index: 3, kind: input, shape index: {}]
  %s4 = inlined_call_operand.vmem [shape: f32[4,1], index: 4, kind: input, shape index: {}]
  %s5 = inlined_call_operand.vmem [shape: f32[4,1], index: 5, kind: input, shape index: {}]
  %s6 = inlined_call_operand.vmem [shape: f32[4,1], index: 6, kind: input, shape index: {}]
  %s7 = inlined_call_operand.hbm [shape: f32[2,4,256], index: 7, kind: output, shape index: {}]
  %s8 = sld [smem:[#allocation0]]
  $region61: #{tpu_custom_call.1} parent=0
    _
  %s10 = ssub.s32 1, %s8
  %s11 = scalar_select 0, %s10, %s8
  $region1: #{tpu_custom_call.1} parent=0
    #allocation3 [shape = 'u8[8192]{0}', space=vmem, size = 0x2000, scoped, tag = 'output window, operand 0']
    #allocation4 [shape = 's32[2]{0}', space=sflag, size = 0x8, scoped, tag = 'scoped memory for tpu_custom_call.1']
    %12 = vsyncpa [#allocation4], 0
    %s13 = scalar_lea.sflag [#allocation4], 1
    %14 = vsyncpa %s13, 0
    loop: start=0, step=1, limit=4
    $region2: #{tpu_custom_call.1} parent=1 // loop_pre_header
      _
    $region3: #{tpu_custom_call.1} parent=1 // loop_header
      %s16 = sphi 0, %s20
      %p17 = scmp.ge.s32.totalorder %s16, 4
      %s26 = sphi 0, %s28
      %s29 = sphi 0, %s26
      %s30 = sphi 0, %s29
      %s46 = sphi 0, %s30
      %s50 = sphi 0, %s50
      %s52 = sphi 0, %s50
      %s53 = sphi 0, %s52
      %s67 = sphi 0, %s53
      %s71 = sphi 0, %s71
      %s73 = sphi 0, %s71
      %s74 = sphi 0, %s73
      %s88 = sphi 0, %s74
      %s92 = sphi 0, %s92
      %s94 = sphi 0, %s92
      %s95 = sphi 0, %s94
      %s109 = sphi 0, %s95
      %s113 = sphi 0, %s113
      %s115 = sphi 0, %s113
      %s116 = sphi 0, %s115
      %s130 = sphi 0, %s116
      %s134 = sphi 0, %s134
      %s136 = sphi 0, %s134
      %s137 = sphi 0, %s136
      %s151 = sphi 0, %s137
      %s155 = sphi 0, %s155
      %s157 = sphi 0, %s155
      %s158 = sphi 0, %s157
      %s172 = sphi 0, %s158
      %s178 = sphi 0, %s180
      %s181 = sphi 0, %s178
      %s182 = sphi 0, %s181
      %s198 = sphi 0, %s182
    $region4: #{tpu_custom_call.1} parent=1 // loop_header_branch
      %19 = sbr.rel (%p17) target = $region8
    $region5: #{tpu_custom_call.1} parent=1 // loop_body
      %s21 = ssub.s32 %s16, 1
      %s22 = ssub.s32 %s16, 2
      %s23 = sadd.s32 %s16, 1
      %s24 = ssub.s32 %s16, %s23
      %p25 = scmp.eq.s32.totalorder %s24, 0
      %s27 = sadd.s32 %s26, 1
      %s28 = scalar_select %p25, %s26, %s27
      %p31 = pneg %p25
      %p32 = scmp.eq.s32.totalorder %s16, 1
      %p33 = por %p31, %p32
      %p34 = scmp.ne.s32.totalorder %s26, %s29
      %p35 = scmp.eq.s32.totalorder %s16, 0
      %p36 = por %p34, %p35
      %p37 = scmp.ne.s32.totalorder %s26, %s29
      %p38 = scmp.eq.s32.totalorder %s21, 1
      %p39 = por %p37, %p38
      %p40 = scmp.ne.s32.totalorder %s29, %s30
      %p41 = scmp.eq.s32.totalorder %s21, 0
      %p42 = por %p40, %p41
      %p43 = scmp.ne.s32.totalorder %s29, %s30
      %p44 = scmp.eq.s32.totalorder %s22, 1
      %p45 = por %p43, %p44
      %p47 = scmp.ne.s32.totalorder %s30, %s46
      %p48 = scmp.eq.s32.totalorder %s22, 0
      %p49 = por %p47, %p48
      %s51 = sadd.s32 %s50, 1
      %p54 = scmp.eq.s32.totalorder %s16, 1
      %p55 = scmp.ne.s32.totalorder %s50, %s52
      %p56 = scmp.eq.s32.totalorder %s16, 0
      %p57 = por %p55, %p56
      %p58 = scmp.ne.s32.totalorder %s50, %s52
      %p59 = scmp.eq.s32.totalorder %s21, 1
      %p60 = por %p58, %p59
      %p61 = scmp.ne.s32.totalorder %s52, %s53
      %p62 = scmp.eq.s32.totalorder %s21, 0
      %p63 = por %p61, %p62
      %p64 = scmp.ne.s32.totalorder %s52, %s53
      %p65 = scmp.eq.s32.totalorder %s22, 1
      %p66 = por %p64, %p65
      %p68 = scmp.ne.s32.totalorder %s53, %s67
      %p69 = scmp.eq.s32.totalorder %s22, 0
      %p70 = por %p68, %p69
      %s72 = sadd.s32 %s71, 1
      %p75 = scmp.eq.s32.totalorder %s16, 1
      %p76 = scmp.ne.s32.totalorder %s71, %s73
      %p77 = scmp.eq.s32.totalorder %s16, 0
      %p78 = por %p76, %p77
      %p79 = scmp.ne.s32.totalorder %s71, %s73
      %p80 = scmp.eq.s32.totalorder %s21, 1
      %p81 = por %p79, %p80
      %p82 = scmp.ne.s32.totalorder %s73, %s74
      %p83 = scmp.eq.s32.totalorder %s21, 0
      %p84 = por %p82, %p83
      %p85 = scmp.ne.s32.totalorder %s73, %s74
      %p86 = scmp.eq.s32.totalorder %s22, 1
      %p87 = por %p85, %p86
      %p89 = scmp.ne.s32.totalorder %s74, %s88
      %p90 = scmp.eq.s32.totalorder %s22, 0
      %p91 = por %p89, %p90
      %s93 = sadd.s32 %s92, 1
      %p96 = scmp.eq.s32.totalorder %s16, 1
      %p97 = scmp.ne.s32.totalorder %s92, %s94
      %p98 = scmp.eq.s32.totalorder %s16, 0
      %p99 = por %p97, %p98
      %p100 = scmp.ne.s32.totalorder %s92, %s94
      %p101 = scmp.eq.s32.totalorder %s21, 1
      %p102 = por %p100, %p101
      %p103 = scmp.ne.s32.totalorder %s94, %s95
      %p104 = scmp.eq.s32.totalorder %s21, 0
      %p105 = por %p103, %p104
      %p106 = scmp.ne.s32.totalorder %s94, %s95
      %p107 = scmp.eq.s32.totalorder %s22, 1
      %p108 = por %p106, %p107
      %p110 = scmp.ne.s32.totalorder %s95, %s109
      %p111 = scmp.eq.s32.totalorder %s22, 0
      %p112 = por %p110, %p111
      %s114 = sadd.s32 %s113, 1
      %p117 = scmp.eq.s32.totalorder %s16, 1
      %p118 = scmp.ne.s32.totalorder %s113, %s115
      %p119 = scmp.eq.s32.totalorder %s16, 0
      %p120 = por %p118, %p119
      %p121 = scmp.ne.s32.totalorder %s113, %s115
      %p122 = scmp.eq.s32.totalorder %s21, 1
      %p123 = por %p121, %p122
      %p124 = scmp.ne.s32.totalorder %s115, %s116
      %p125 = scmp.eq.s32.totalorder %s21, 0
      %p126 = por %p124, %p125
      %p127 = scmp.ne.s32.totalorder %s115, %s116
      %p128 = scmp.eq.s32.totalorder %s22, 1
      %p129 = por %p127, %p128
      %p131 = scmp.ne.s32.totalorder %s116, %s130
      %p132 = scmp.eq.s32.totalorder %s22, 0
      %p133 = por %p131, %p132
      %s135 = sadd.s32 %s134, 1
      %p138 = scmp.eq.s32.totalorder %s16, 1
      %p139 = scmp.ne.s32.totalorder %s134, %s136
      %p140 = scmp.eq.s32.totalorder %s16, 0
      %p141 = por %p139, %p140
      %p142 = scmp.ne.s32.totalorder %s134, %s136
      %p143 = scmp.eq.s32.totalorder %s21, 1
      %p144 = por %p142, %p143
      %p145 = scmp.ne.s32.totalorder %s136, %s137
      %p146 = scmp.eq.s32.totalorder %s21, 0
      %p147 = por %p145, %p146
      %p148 = scmp.ne.s32.totalorder %s136, %s137
      %p149 = scmp.eq.s32.totalorder %s22, 1
      %p150 = por %p148, %p149
      %p152 = scmp.ne.s32.totalorder %s137, %s151
      %p153 = scmp.eq.s32.totalorder %s22, 0
      %p154 = por %p152, %p153
      %s156 = sadd.s32 %s155, 1
      %p159 = scmp.eq.s32.totalorder %s16, 1
      %p160 = scmp.ne.s32.totalorder %s155, %s157
      %p161 = scmp.eq.s32.totalorder %s16, 0
      %p162 = por %p160, %p161
      %p163 = scmp.ne.s32.totalorder %s155, %s157
      %p164 = scmp.eq.s32.totalorder %s21, 1
      %p165 = por %p163, %p164
      %p166 = scmp.ne.s32.totalorder %s157, %s158
      %p167 = scmp.eq.s32.totalorder %s21, 0
      %p168 = por %p166, %p167
      %p169 = scmp.ne.s32.totalorder %s157, %s158
      %p170 = scmp.eq.s32.totalorder %s22, 1
      %p171 = por %p169, %p170
      %p173 = scmp.ne.s32.totalorder %s158, %s172
      %p174 = scmp.eq.s32.totalorder %s22, 0
      %p175 = por %p173, %p174
      %s176 = ssub.s32 %s16, %s23
      %p177 = scmp.eq.s32.totalorder %s176, 0
      %s179 = sadd.s32 %s178, 1
      %s180 = scalar_select %p177, %s178, %s179
      %p183 = pneg %p177
      %p184 = scmp.eq.s32.totalorder %s16, 1
      %p185 = por %p183, %p184
      %p186 = scmp.ne.s32.totalorder %s178, %s181
      %p187 = scmp.eq.s32.totalorder %s16, 0
      %p188 = por %p186, %p187
      %p189 = scmp.ne.s32.totalorder %s178, %s181
      %p190 = scmp.eq.s32.totalorder %s21, 1
      %p191 = por %p189, %p190
      %p192 = scmp.ne.s32.totalorder %s181, %s182
      %p193 = scmp.eq.s32.totalorder %s21, 0
      %p194 = por %p192, %p193
      %p195 = scmp.ne.s32.totalorder %s181, %s182
      %p196 = scmp.eq.s32.totalorder %s22, 1
      %p197 = por %p195, %p196
      %p199 = scmp.ne.s32.totalorder %s182, %s198
      %p200 = scmp.eq.s32.totalorder %s22, 0
      %p201 = por %p199, %p200
      %p202 = scmp.le.s32.totalorder 1, %s16
      %p203 = scmp.lt.s32.totalorder %s16, 3
      %p204 = pnand %p202, %p203
      %p205 = pneg %p204
      // Predicated region
      $region9: #{tpu_custom_call.1} parent=5 // pred_check
        _
      $region10: #{tpu_custom_call.1} parent=5 // pred_check_branch
        %207 = sbr.rel (%p204) target = $region12
      $region11: #{tpu_custom_call.1} parent=5 // pred_region
        %s208 = ssub.s32 %s16, 1
        // Predicated region
        $region13: #{tpu_custom_call.1} parent=11 // pred_check
          %p209 = pneg %p63
        $region14: #{tpu_custom_call.1} parent=11 // pred_check_branch
          %211 = sbr.rel (%p209) target = $region16
        $region15: #{tpu_custom_call.1} parent=11 // pred_region
          _
        $region16: #{tpu_custom_call.1} parent=11 // pred_fallthru
          _
        // Predicated region
        $region17: #{tpu_custom_call.1} parent=11 // pred_check
          %p212 = pneg %p84
        $region18: #{tpu_custom_call.1} parent=11 // pred_check_branch
          %214 = sbr.rel (%p212) target = $region20
        $region19: #{tpu_custom_call.1} parent=11 // pred_region
          _
        $region20: #{tpu_custom_call.1} parent=11 // pred_fallthru
          _
        // Predicated region
        $region21: #{tpu_custom_call.1} parent=11 // pred_check
          %p215 = pneg %p105
        $region22: #{tpu_custom_call.1} parent=11 // pred_check_branch
          %217 = sbr.rel (%p215) target = $region24
        $region23: #{tpu_custom_call.1} parent=11 // pred_region
          _
        $region24: #{tpu_custom_call.1} parent=11 // pred_fallthru
          _
        // Predicated region
        $region25: #{tpu_custom_call.1} parent=11 // pred_check
          %p218 = pneg %p126
        $region26: #{tpu_custom_call.1} parent=11 // pred_check_branch
          %220 = sbr.rel (%p218) target = $region28
        $region27: #{tpu_custom_call.1} parent=11 // pred_region
          _
        $region28: #{tpu_custom_call.1} parent=11 // pred_fallthru
          _
        // Predicated region
        $region29: #{tpu_custom_call.1} parent=11 // pred_check
          %p221 = pneg %p147
        $region30: #{tpu_custom_call.1} parent=11 // pred_check_branch
          %223 = sbr.rel (%p221) target = $region32
        $region31: #{tpu_custom_call.1} parent=11 // pred_region
          _
        $region32: #{tpu_custom_call.1} parent=11 // pred_fallthru
          _
        // Predicated region
        $region33: #{tpu_custom_call.1} parent=11 // pred_check
          %p224 = pneg %p168
        $region34: #{tpu_custom_call.1} parent=11 // pred_check_branch
          %226 = sbr.rel (%p224) target = $region36
        $region35: #{tpu_custom_call.1} parent=11 // pred_region
          _
        $region36: #{tpu_custom_call.1} parent=11 // pred_fallthru
          _
      $region12: #{tpu_custom_call.1} parent=5 // pred_fallthru
        _
      %p227 = scmp.lt.s32.totalorder %s16, 2
      // Predicated region
      $region37: #{tpu_custom_call.1} parent=5 // pred_check
        %p228 = pneg %p227
      $region38: #{tpu_custom_call.1} parent=5 // pred_check_branch
        %230 = sbr.rel (%p228) target = $region40
      $region39: #{tpu_custom_call.1} parent=5 // pred_region
        // Predicated region
        $region41: #{tpu_custom_call.1} parent=39 // pred_check
          %p231 = pneg %p36
        $region42: #{tpu_custom_call.1} parent=39 // pred_check_branch
          %233 = sbr.rel (%p231) target = $region44
        $region43: #{tpu_custom_call.1} parent=39 // pred_region
          %p234 = scmp.lt.s32.totalorder %s16, 1
          %s235 = scalar_select %p234, %s16, 1
          %s236 = smul.addr %s235, 2
          %s237 = smul.addr %s236, 4
          %s238 = scalar_lea.vmem %s0, %s237
        $region44: #{tpu_custom_call.1} parent=39 // pred_fallthru
          _
      $region40: #{tpu_custom_call.1} parent=5 // pred_fallthru
        _
      %p239 = scmp.le.s32.totalorder 1, %s16
      %p240 = scmp.lt.s32.totalorder %s16, 3
      %p241 = pnand %p239, %p240
      %p242 = pneg %p241
      // Predicated region
      $region45: #{tpu_custom_call.1} parent=5 // pred_check
        _
      $region46: #{tpu_custom_call.1} parent=5 // pred_check_branch
        %244 = sbr.rel (%p241) target = $region48
      $region47: #{tpu_custom_call.1} parent=5 // pred_region
        %s245 = ssub.s32 %s16, 1
        %p246 = scmp.lt.s32.totalorder %s21, 1
        %s247 = scalar_select %p246, %s21, 1
        %s248 = smul.addr %s247, 2
        %s249 = smul.addr %s248, 4
        %s250 = scalar_lea.vmem %s0, %s249
        %p251 = pneg %p42
        %p252 = pneg %p39
        %p253 = pneg %p63
        %p254 = pneg %p60
        %p255 = pneg %p84
        %p256 = pneg %p81
        %p257 = pneg %p105
        %p258 = pneg %p102
        %p259 = pneg %p126
        %p260 = pneg %p123
        %p261 = pneg %p147
        %p262 = pneg %p144
        %p263 = pneg %p168
        %p264 = pneg %p165
        %p265 = pneg %p194
        %p266 = pneg %p191
        %s267 = sand.u32 %s181, 1
        %s268 = scalar_lea.sflag [#allocation4], %s267
        %s269 = sand.u32 %s181, 1
        %s270 = smul.addr %s269, 8
        %s271 = scalar_lea.vmem [#allocation3], %s270
        %p272 = scmp.lt.s32.totalorder %s21, 1
        %s273 = scalar_select %p272, %s21, 1
        %s274 = smul.addr %s273, 2
        %s275 = smul.addr %s274, 4
        %s276 = scalar_lea.vmem %s0, %s275
        %v277 = vlaneseq
        %v278 = vand.u32 %v277, 127
        %v279 = vadd.s32 %v278, 128
        %vm280 = vcmp.lt.s32.totalorder %v278, 0
        %v281 = vsub.s32 0, %v278
        %v282 = vsel %vm280, %v281, %v278
        %v283 = vshrl.u32 %v282, 4
        %v284 = vand.u32 %v282, 15
        %v285 = vsub.s32 0, %v284
        %v286 = vsel %vm280, %v285, %v284
        %vm287 = vcmp.lt.s32.totalorder %v279, 0
        %v288 = vsub.s32 0, %v279
        %v289 = vsel %vm287, %v288, %v279
        %v290 = vshrl.u32 %v289, 4
        %v291 = vand.u32 %v289, 15
        %v292 = vsub.s32 0, %v291
        %v293 = vsel %vm287, %v292, %v291
        %vm294 = vcmp.ne.s32.totalorder %v286, 0
        %vm295 = vcmp.ne.s32.totalorder %v293, 0
        %vm296 = vcmp.lt.s32.totalorder %v286, 0
        %vm297 = vcmp.lt.s32.totalorder %v293, 0
        %vm298 = vmand %vm296, %vm294
        %vm299 = vmand %vm297, %vm295
        %v300 = vadd.s32 %v286, 16
        %v301 = vadd.s32 %v293, 16
        %v302 = vsel %vm298, %v300, %v286
        %v303 = vsel %vm299, %v301, %v293
        %vm304 = vcmp.ne.s32.totalorder %v302, 0
        %vm305 = vcmp.ne.s32.totalorder %v303, 0
        %vm306 = vcmp.ne.s32.totalorder %v302, 15
        %vm307 = vcmp.ne.s32.totalorder %v303, 15
        %vm308 = vcmask 134144
        %309 = vst.msk [vmem:[#allocation2] sm:$0xf] %vm308, 0.0
        %vm310 = vcmask 273544
        %311 = vst.msk [vmem:[#allocation2 + $0x8] sm:$0xf] %vm310, 0.0
        %v312 = vld [vmem:[%s276] sm:$0xff]
        %314 = vrot.lane.b32.xlu0 %v312, 17
        %v315 = vpop.permute.xlu0 %314
        %v316 = vrot.slane %v315, 4
        %vm317 = vcmask 138240
        %v318 = vsel %vm317, %v316, %v315
        %vm321 = vcmask 1043592
        %vm322 = vcmask 1047556
        %vm323 = vmor %vm322, %vm321
        %324 = vst.msk [vmem:[#allocation2] sm:$0xff] %vm323, %v318
        %325 = vst.msk [vmem:[#allocation2 + $0x8] sm:$0xf] %vm308, %v316
        %v326 = vld [vmem:[#allocation2] sm:$0xff]
        %v327 = vsel %vm304, 1, 0
        %v328 = vsel %vm305, 1, 0
        %vm329 = vcmp.eq.s32.totalorder %v327, 1
        %vm330 = vcmp.eq.s32.totalorder %v328, 1
        %v332 = vcombine.high %v326, %v326
        %v334 = vsel %vm329, %v326, 0.0
        %v335 = vsel %vm330, %v332, 0.0
        %v336 = vld [vmem:[%s1] sm:$0xf]
        %v337 = vld [vmem:[#allocation2 + $0x8] sm:$0xf]
        %s338 = scalar_lea.vmem %s1, 4
        %v339 = vld [vmem:[%s338] sm:$0xf]
        %341 = vrot.lane.b32.xlu0 %v326, 127
        %v342 = vpop.permute.xlu0 %341
        %343 = vrot.lane.b32.xlu0 %v332, 127
        %v344 = vpop.permute.xlu0 %343
        %345 = vrot.lane.b32.xlu0 %v337, 127
        %v346 = vpop.permute.xlu0 %345
        %vm347 = vcmask 1039360
        %v348 = vsel %vm347, %v342, %v344
        %v349 = vsel %vm347, %v344, %v346
        %vm350 = vcmask 31744
        %v352 = vsel %vm350, %v339, 0
        %vm354 = vcmask 1043456
        %v355 = vsel %vm354, %v348, 0
        %v357 = vsel %vm354, %v349, 0
        %359 = vmatprep.subr.mxu0 %v357
        %360 = vmatpush1.msra.mxu0 %v355
        %361 = vmatprep.subr.mxu0 0.0
        %362 = vmatpush1.msra.mxu0 0.0
        %363 = vmatprep.subr.mxu0 0.0
        %364 = vmatpush1.msra.mxu0 0.0
        %365 = vmatprep.subr.mxu0 0.0
        %366 = vmatpush1.msra.mxu0 0.0
        %367 = vmatprep.subr.mxu0 0.0
        %368 = vmatpush1.msra.mxu0 0.0
        %369 = vmatprep.subr.mxu0 0.0
        %370 = vmatpush1.msra.mxu0 0.0
        %371 = vmatprep.subr.mxu0 0.0
        %372 = vmatpush1.msra.mxu0 0.0
        %373 = vmatprep.subr.mxu0 0.0
        %374 = vmatpush1.msra.mxu0 0.0
        %375 = vmatprep.subr.mxu0 0.0
        %376 = vmatpush1.msra.mxu0 0.0
        %377 = vmatprep.subr.mxu0 0.0
        %378 = vmatpush1.msra.mxu0 0.0
        %379 = vmatprep.subr.mxu0 0.0
        %380 = vmatpush1.msra.mxu0 0.0
        %381 = vmatprep.subr.mxu0 0.0
        %382 = vmatpush1.msra.mxu0 0.0
        %383 = vmatprep.subr.mxu0 0.0
        %384 = vmatpush1.msra.mxu0 0.0
        %385 = vmatprep.subr.mxu0 0.0
        %386 = vmatpush1.msra.mxu0 0.0
        %387 = vmatprep.subr.mxu0 0.0
        %388 = vmatpush1.msra.mxu0 0.0
        %389 = vmatprep.subr.mxu0 0.0
        %390 = vmatpush1.msra.mxu0 0.0
        %391 = vmatprep.subr.mxu0 0.0
        %392 = vmatpush1.msra.mxu0 0.0
        %393 = vmatprep.subr.mxu0 0.0
        %394 = vmatpush1.msra.mxu0 0.0
        %395 = vmatprep.subr.mxu0 0.0
        %396 = vmatpush1.msra.mxu0 0.0
        %397 = vmatprep.subr.mxu0 0.0
        %398 = vmatpush1.msra.mxu0 0.0
        %399 = vmatprep.subr.mxu0 0.0
        %400 = vmatpush1.msra.mxu0 0.0
        %401 = vmatprep.subr.mxu0 0.0
        %402 = vmatpush1.msra.mxu0 0.0
        %403 = vmatprep.subr.mxu0 0.0
        %404 = vmatpush1.msra.mxu0 0.0
        %405 = vmatprep.subr.mxu0 0.0
        %406 = vmatpush1.msra.mxu0 0.0
        %407 = vmatprep.subr.mxu0 0.0
        %408 = vmatpush1.msra.mxu0 0.0
        %409 = vmatprep.subr.mxu0 0.0
        %410 = vmatpush1.msra.mxu0 0.0
        %411 = vmatprep.subr.mxu0 0.0
        %412 = vmatpush1.msra.mxu0 0.0
        %413 = vmatprep.subr.mxu0 0.0
        %414 = vmatpush1.msra.mxu0 0.0
        %415 = vmatprep.subr.mxu0 0.0
        %416 = vmatpush1.msra.mxu0 0.0
        %417 = vmatprep.subr.mxu0 0.0
        %418 = vmatpush1.msra.mxu0 0.0
        %419 = vmatprep.subr.mxu0 0.0
        %420 = vmatpush1.msra.mxu0 0.0
        %421 = vmatprep.subr.mxu0 0.0
        %422 = vmatpush1.msra.mxu0 0.0
        %423 = vmatprep.mubr.f32.mxu0 0.0
        %424 = vmatmul.mubr.f32.gmra.mrb[0].mxu0 %v352
        %v425 = vpop.f32.mrb[0].mxu0
        %v426 = vadd.f32 0.0, %v425
        %v427 = vpop.f32.mrb[0].mxu0
        %v428 = vadd.f32 0.0, %v427
        %429 = vdwg.mxu0
        %v431 = vsel %vm350, %v336, 0
        %v434 = vsel %vm354, %v334, 0
        %v437 = vsel %vm354, %v335, 0
        %439 = vmatprep.subr.mxu0 %v437
        %440 = vmatpush1.msra.mxu0 %v434
        %441 = vmatprep.subr.mxu0 0.0
        %442 = vmatpush1.msra.mxu0 0.0
        %443 = vmatprep.subr.mxu0 0.0
        %444 = vmatpush1.msra.mxu0 0.0
        %445 = vmatprep.subr.mxu0 0.0
        %446 = vmatpush1.msra.mxu0 0.0
        %447 = vmatprep.subr.mxu0 0.0
        %448 = vmatpush1.msra.mxu0 0.0
        %449 = vmatprep.subr.mxu0 0.0
        %450 = vmatpush1.msra.mxu0 0.0
        %451 = vmatprep.subr.mxu0 0.0
        %452 = vmatpush1.msra.mxu0 0.0
        %453 = vmatprep.subr.mxu0 0.0
        %454 = vmatpush1.msra.mxu0 0.0
        %455 = vmatprep.subr.mxu0 0.0
        %456 = vmatpush1.msra.mxu0 0.0
        %457 = vmatprep.subr.mxu0 0.0
        %458 = vmatpush1.msra.mxu0 0.0
        %459 = vmatprep.subr.mxu0 0.0
        %460 = vmatpush1.msra.mxu0 0.0
        %461 = vmatprep.subr.mxu0 0.0
        %462 = vmatpush1.msra.mxu0 0.0
        %463 = vmatprep.subr.mxu0 0.0
        %464 = vmatpush1.msra.mxu0 0.0
        %465 = vmatprep.subr.mxu0 0.0
        %466 = vmatpush1.msra.mxu0 0.0
        %467 = vmatprep.subr.mxu0 0.0
        %468 = vmatpush1.msra.mxu0 0.0
        %469 = vmatprep.subr.mxu0 0.0
        %470 = vmatpush1.msra.mxu0 0.0
        %471 = vmatprep.subr.mxu0 0.0
        %472 = vmatpush1.msra.mxu0 0.0
        %473 = vmatprep.subr.mxu0 0.0
        %474 = vmatpush1.msra.mxu0 0.0
        %475 = vmatprep.subr.mxu0 0.0
        %476 = vmatpush1.msra.mxu0 0.0
        %477 = vmatprep.subr.mxu0 0.0
        %478 = vmatpush1.msra.mxu0 0.0
        %479 = vmatprep.subr.mxu0 0.0
        %480 = vmatpush1.msra.mxu0 0.0
        %481 = vmatprep.subr.mxu0 0.0
        %482 = vmatpush1.msra.mxu0 0.0
        %483 = vmatprep.subr.mxu0 0.0
        %484 = vmatpush1.msra.mxu0 0.0
        %485 = vmatprep.subr.mxu0 0.0
        %486 = vmatpush1.msra.mxu0 0.0
        %487 = vmatprep.subr.mxu0 0.0
        %488 = vmatpush1.msra.mxu0 0.0
        %489 = vmatprep.subr.mxu0 0.0
        %490 = vmatpush1.msra.mxu0 0.0
        %491 = vmatprep.subr.mxu0 0.0
        %492 = vmatpush1.msra.mxu0 0.0
        %493 = vmatprep.subr.mxu0 0.0
        %494 = vmatpush1.msra.mxu0 0.0
        %495 = vmatprep.subr.mxu0 0.0
        %496 = vmatpush1.msra.mxu0 0.0
        %497 = vmatprep.subr.mxu0 0.0
        %498 = vmatpush1.msra.mxu0 0.0
        %499 = vmatprep.subr.mxu0 0.0
        %500 = vmatpush1.msra.mxu0 0.0
        %501 = vmatprep.subr.mxu0 0.0
        %502 = vmatpush1.msra.mxu0 0.0
        %503 = vmatprep.mubr.f32.mxu0 0.0
        %504 = vmatmul.mubr.f32.gmra.mrb[0].mxu0 %v431
        %v505 = vpop.f32.mrb[0].mxu0
        %v506 = vadd.f32 %v426, %v505
        %v507 = vpop.f32.mrb[0].mxu0
        %v508 = vadd.f32 %v428, %v507
        %509 = vdwg.mxu0
        %v510 = vld [vmem:[#allocation2] sm:$0xff]
        %v511 = vld [vmem:[#allocation2 + $0x8] sm:$0xf]
        %v512 = vsel %vm306, 1, 0
        %v513 = vsel %vm307, 1, 0
        %vm514 = vcmp.eq.s32.totalorder %v512, 1
        %vm515 = vcmp.eq.s32.totalorder %v513, 1
        %v518 = vcombine.high %v510, %v510
        %519 = vrot.lane.b32.xlu0 %v510, 126
        %v520 = vpop.permute.xlu0 %519
        %521 = vrot.lane.b32.xlu0 %v518, 126
        %v522 = vpop.permute.xlu0 %521
        %523 = vrot.lane.b32.xlu0 %v511, 126
        %v524 = vpop.permute.xlu0 %523
        %vm525 = vcmask 1031168
        %v526 = vsel %vm525, %v520, %v522
        %v527 = vsel %vm525, %v522, %v524
        %v530 = vsel %vm514, %v526, 0.0
        %v531 = vsel %vm515, %v527, 0.0
        %s532 = scalar_lea.vmem %s1, 8
        %v533 = vld [vmem:[%s532] sm:$0xf]
        %v535 = vsel %vm350, %v533, 0
        %v538 = vsel %vm354, %v530, 0
        %v541 = vsel %vm354, %v531, 0
        %543 = vmatprep.subr.mxu0 %v541
        %544 = vmatpush1.msra.mxu0 %v538
        %545 = vmatprep.subr.mxu0 0.0
        %546 = vmatpush1.msra.mxu0 0.0
        %547 = vmatprep.subr.mxu0 0.0
        %548 = vmatpush1.msra.mxu0 0.0
        %549 = vmatprep.subr.mxu0 0.0
        %550 = vmatpush1.msra.mxu0 0.0
        %551 = vmatprep.subr.mxu0 0.0
        %552 = vmatpush1.msra.mxu0 0.0
        %553 = vmatprep.subr.mxu0 0.0
        %554 = vmatpush1.msra.mxu0 0.0
        %555 = vmatprep.subr.mxu0 0.0
        %556 = vmatpush1.msra.mxu0 0.0
        %557 = vmatprep.subr.mxu0 0.0
        %558 = vmatpush1.msra.mxu0 0.0
        %559 = vmatprep.subr.mxu0 0.0
        %560 = vmatpush1.msra.mxu0 0.0
        %561 = vmatprep.subr.mxu0 0.0
        %562 = vmatpush1.msra.mxu0 0.0
        %563 = vmatprep.subr.mxu0 0.0
        %564 = vmatpush1.msra.mxu0 0.0
        %565 = vmatprep.subr.mxu0 0.0
        %566 = vmatpush1.msra.mxu0 0.0
        %567 = vmatprep.subr.mxu0 0.0
        %568 = vmatpush1.msra.mxu0 0.0
        %569 = vmatprep.subr.mxu0 0.0
        %570 = vmatpush1.msra.mxu0 0.0
        %571 = vmatprep.subr.mxu0 0.0
        %572 = vmatpush1.msra.mxu0 0.0
        %573 = vmatprep.subr.mxu0 0.0
        %574 = vmatpush1.msra.mxu0 0.0
        %575 = vmatprep.subr.mxu0 0.0
        %576 = vmatpush1.msra.mxu0 0.0
        %577 = vmatprep.subr.mxu0 0.0
        %578 = vmatpush1.msra.mxu0 0.0
        %579 = vmatprep.subr.mxu0 0.0
        %580 = vmatpush1.msra.mxu0 0.0
        %581 = vmatprep.subr.mxu0 0.0
        %582 = vmatpush1.msra.mxu0 0.0
        %583 = vmatprep.subr.mxu0 0.0
        %584 = vmatpush1.msra.mxu0 0.0
        %585 = vmatprep.subr.mxu0 0.0
        %586 = vmatpush1.msra.mxu0 0.0
        %587 = vmatprep.subr.mxu0 0.0
        %588 = vmatpush1.msra.mxu0 0.0
        %589 = vmatprep.subr.mxu0 0.0
        %590 = vmatpush1.msra.mxu0 0.0
        %591 = vmatprep.subr.mxu0 0.0
        %592 = vmatpush1.msra.mxu0 0.0
        %593 = vmatprep.subr.mxu0 0.0
        %594 = vmatpush1.msra.mxu0 0.0
        %595 = vmatprep.subr.mxu0 0.0
        %596 = vmatpush1.msra.mxu0 0.0
        %597 = vmatprep.subr.mxu0 0.0
        %598 = vmatpush1.msra.mxu0 0.0
        %599 = vmatprep.subr.mxu0 0.0
        %600 = vmatpush1.msra.mxu0 0.0
        %601 = vmatprep.subr.mxu0 0.0
        %602 = vmatpush1.msra.mxu0 0.0
        %603 = vmatprep.subr.mxu0 0.0
        %604 = vmatpush1.msra.mxu0 0.0
        %605 = vmatprep.subr.mxu0 0.0
        %606 = vmatpush1.msra.mxu0 0.0
        %607 = vmatprep.mubr.f32.mxu0 0.0
        %608 = vmatmul.mubr.f32.gmra.mrb[0].mxu0 %v535
        %v609 = vpop.f32.mrb[0].mxu0
        %v610 = vadd.f32 0.0, %v609
        %v611 = vpop.f32.mrb[0].mxu0
        %v612 = vadd.f32 0.0, %v611
        %613 = vdwg.mxu0
        %v614 = vadd.f32 %v506, %v610
        %v615 = vadd.f32 %v508, %v612
        %v616 = vld [vmem:[#allocation2] sm:$0xff]
        %v617 = vld [vmem:[#allocation2 + $0x8] sm:$0xf]
        %v620 = vcombine.high %v616, %v616
        %621 = vrot.lane.b32.xlu0 %v616, 112
        %v622 = vpop.permute.xlu0 %621
        %623 = vrot.lane.b32.xlu0 %v620, 112
        %v624 = vpop.permute.xlu0 %623
        %625 = vrot.lane.b32.xlu0 %v617, 112
        %v626 = vpop.permute.xlu0 %625
        %vm627 = vcmask 916480
        %v628 = vsel %vm627, %v622, %v624
        %v629 = vsel %vm627, %v624, %v626
        %v632 = vsel %vm329, %v628, 0.0
        %v633 = vsel %vm330, %v629, 0.0
        %s634 = scalar_lea.vmem %s1, 12
        %v635 = vld [vmem:[%s634] sm:$0xf]
        %v637 = vsel %vm350, %v635, 0
        %v640 = vsel %vm354, %v632, 0
        %v643 = vsel %vm354, %v633, 0
        %645 = vmatprep.subr.mxu0 %v643
        %646 = vmatpush1.msra.mxu0 %v640
        %647 = vmatprep.subr.mxu0 0.0
        %648 = vmatpush1.msra.mxu0 0.0
        %649 = vmatprep.subr.mxu0 0.0
        %650 = vmatpush1.msra.mxu0 0.0
        %651 = vmatprep.subr.mxu0 0.0
        %652 = vmatpush1.msra.mxu0 0.0
        %653 = vmatprep.subr.mxu0 0.0
        %654 = vmatpush1.msra.mxu0 0.0
        %655 = vmatprep.subr.mxu0 0.0
        %656 = vmatpush1.msra.mxu0 0.0
        %657 = vmatprep.subr.mxu0 0.0
        %658 = vmatpush1.msra.mxu0 0.0
        %659 = vmatprep.subr.mxu0 0.0
        %660 = vmatpush1.msra.mxu0 0.0
        %661 = vmatprep.subr.mxu0 0.0
        %662 = vmatpush1.msra.mxu0 0.0
        %663 = vmatprep.subr.mxu0 0.0
        %664 = vmatpush1.msra.mxu0 0.0
        %665 = vmatprep.subr.mxu0 0.0
        %666 = vmatpush1.msra.mxu0 0.0
        %667 = vmatprep.subr.mxu0 0.0
        %668 = vmatpush1.msra.mxu0 0.0
        %669 = vmatprep.subr.mxu0 0.0
        %670 = vmatpush1.msra.mxu0 0.0
        %671 = vmatprep.subr.mxu0 0.0
        %672 = vmatpush1.msra.mxu0 0.0
        %673 = vmatprep.subr.mxu0 0.0
        %674 = vmatpush1.msra.mxu0 0.0
        %675 = vmatprep.subr.mxu0 0.0
        %676 = vmatpush1.msra.mxu0 0.0
        %677 = vmatprep.subr.mxu0 0.0
        %678 = vmatpush1.msra.mxu0 0.0
        %679 = vmatprep.subr.mxu0 0.0
        %680 = vmatpush1.msra.mxu0 0.0
        %681 = vmatprep.subr.mxu0 0.0
        %682 = vmatpush1.msra.mxu0 0.0
        %683 = vmatprep.subr.mxu0 0.0
        %684 = vmatpush1.msra.mxu0 0.0
        %685 = vmatprep.subr.mxu0 0.0
        %686 = vmatpush1.msra.mxu0 0.0
        %687 = vmatprep.subr.mxu0 0.0
        %688 = vmatpush1.msra.mxu0 0.0
        %689 = vmatprep.subr.mxu0 0.0
        %690 = vmatpush1.msra.mxu0 0.0
        %691 = vmatprep.subr.mxu0 0.0
        %692 = vmatpush1.msra.mxu0 0.0
        %693 = vmatprep.subr.mxu0 0.0
        %694 = vmatpush1.msra.mxu0 0.0
        %695 = vmatprep.subr.mxu0 0.0
        %696 = vmatpush1.msra.mxu0 0.0
        %697 = vmatprep.subr.mxu0 0.0
        %698 = vmatpush1.msra.mxu0 0.0
        %699 = vmatprep.subr.mxu0 0.0
        %700 = vmatpush1.msra.mxu0 0.0
        %701 = vmatprep.subr.mxu0 0.0
        %702 = vmatpush1.msra.mxu0 0.0
        %703 = vmatprep.subr.mxu0 0.0
        %704 = vmatpush1.msra.mxu0 0.0
        %705 = vmatprep.subr.mxu0 0.0
        %706 = vmatpush1.msra.mxu0 0.0
        %707 = vmatprep.subr.mxu0 0.0
        %708 = vmatpush1.msra.mxu0 0.0
        %709 = vmatprep.mubr.f32.mxu0 0.0
        %710 = vmatmul.mubr.f32.gmra.mrb[0].mxu0 %v637
        %v711 = vpop.f32.mrb[0].mxu0
        %v712 = vadd.f32 0.0, %v711
        %v713 = vpop.f32.mrb[0].mxu0
        %v714 = vadd.f32 0.0, %v713
        %715 = vdwg.mxu0
        %v716 = vadd.f32 %v614, %v712
        %v717 = vadd.f32 %v615, %v714
        %v718 = vld [vmem:[#allocation2] sm:$0xff]
        %v719 = vld [vmem:[#allocation2 + $0x8] sm:$0xf]
        %s720 = scalar_lea.vmem %s1, 16
        %v721 = vld [vmem:[%s720] sm:$0xf]
        %v724 = vcombine.high %v718, %v718
        %725 = vrot.lane.b32.xlu0 %v718, 111
        %v726 = vpop.permute.xlu0 %725
        %727 = vrot.lane.b32.xlu0 %v724, 111
        %v728 = vpop.permute.xlu0 %727
        %729 = vrot.lane.b32.xlu0 %v719, 111
        %v730 = vpop.permute.xlu0 %729
        %vm731 = vcmask 908288
        %v732 = vsel %vm731, %v726, %v728
        %v733 = vsel %vm731, %v728, %v730
        %v735 = vsel %vm350, %v721, 0
        %v737 = vsel %vm354, %v732, 0
        %v739 = vsel %vm354, %v733, 0
        %741 = vmatprep.subr.mxu0 %v739
        %742 = vmatpush1.msra.mxu0 %v737
        %743 = vmatprep.subr.mxu0 0.0
        %744 = vmatpush1.msra.mxu0 0.0
        %745 = vmatprep.subr.mxu0 0.0
        %746 = vmatpush1.msra.mxu0 0.0
        %747 = vmatprep.subr.mxu0 0.0
        %748 = vmatpush1.msra.mxu0 0.0
        %749 = vmatprep.subr.mxu0 0.0
        %750 = vmatpush1.msra.mxu0 0.0
        %751 = vmatprep.subr.mxu0 0.0
        %752 = vmatpush1.msra.mxu0 0.0
        %753 = vmatprep.subr.mxu0 0.0
        %754 = vmatpush1.msra.mxu0 0.0
        %755 = vmatprep.subr.mxu0 0.0
        %756 = vmatpush1.msra.mxu0 0.0
        %757 = vmatprep.subr.mxu0 0.0
        %758 = vmatpush1.msra.mxu0 0.0
        %759 = vmatprep.subr.mxu0 0.0
        %760 = vmatpush1.msra.mxu0 0.0
        %761 = vmatprep.subr.mxu0 0.0
        %762 = vmatpush1.msra.mxu0 0.0
        %763 = vmatprep.subr.mxu0 0.0
        %764 = vmatpush1.msra.mxu0 0.0
        %765 = vmatprep.subr.mxu0 0.0
        %766 = vmatpush1.msra.mxu0 0.0
        %767 = vmatprep.subr.mxu0 0.0
        %768 = vmatpush1.msra.mxu0 0.0
        %769 = vmatprep.subr.mxu0 0.0
        %770 = vmatpush1.msra.mxu0 0.0
        %771 = vmatprep.subr.mxu0 0.0
        %772 = vmatpush1.msra.mxu0 0.0
        %773 = vmatprep.subr.mxu0 0.0
        %774 = vmatpush1.msra.mxu0 0.0
        %775 = vmatprep.subr.mxu0 0.0
        %776 = vmatpush1.msra.mxu0 0.0
        %777 = vmatprep.subr.mxu0 0.0
        %778 = vmatpush1.msra.mxu0 0.0
        %779 = vmatprep.subr.mxu0 0.0
        %780 = vmatpush1.msra.mxu0 0.0
        %781 = vmatprep.subr.mxu0 0.0
        %782 = vmatpush1.msra.mxu0 0.0
        %783 = vmatprep.subr.mxu0 0.0
        %784 = vmatpush1.msra.mxu0 0.0
        %785 = vmatprep.subr.mxu0 0.0
        %786 = vmatpush1.msra.mxu0 0.0
        %787 = vmatprep.subr.mxu0 0.0
        %788 = vmatpush1.msra.mxu0 0.0
        %789 = vmatprep.subr.mxu0 0.0
        %790 = vmatpush1.msra.mxu0 0.0
        %791 = vmatprep.subr.mxu0 0.0
        %792 = vmatpush1.msra.mxu0 0.0
        %793 = vmatprep.subr.mxu0 0.0
        %794 = vmatpush1.msra.mxu0 0.0
        %795 = vmatprep.subr.mxu0 0.0
        %796 = vmatpush1.msra.mxu0 0.0
        %797 = vmatprep.subr.mxu0 0.0
        %798 = vmatpush1.msra.mxu0 0.0
        %799 = vmatprep.subr.mxu0 0.0
        %800 = vmatpush1.msra.mxu0 0.0
        %801 = vmatprep.subr.mxu0 0.0
        %802 = vmatpush1.msra.mxu0 0.0
        %803 = vmatprep.subr.mxu0 0.0
        %804 = vmatpush1.msra.mxu0 0.0
        %805 = vmatprep.mubr.f32.mxu0 0.0
        %806 = vmatmul.mubr.f32.gmra.mrb[0].mxu0 %v735
        %v807 = vpop.f32.mrb[0].mxu0
        %v808 = vadd.f32 0.0, %v807
        %v809 = vpop.f32.mrb[0].mxu0
        %v810 = vadd.f32 0.0, %v809
        %811 = vdwg.mxu0
        %v812 = vadd.f32 %v716, %v808
        %v813 = vadd.f32 %v717, %v810
        %v814 = vld [vmem:[#allocation2] sm:$0xff]
        %v815 = vld [vmem:[#allocation2 + $0x8] sm:$0xf]
        %v818 = vcombine.high %v814, %v814
        %819 = vrot.lane.b32.xlu0 %v814, 110
        %v820 = vpop.permute.xlu0 %819
        %821 = vrot.lane.b32.xlu0 %v818, 110
        %v822 = vpop.permute.xlu0 %821
        %823 = vrot.lane.b32.xlu0 %v815, 110
        %v824 = vpop.permute.xlu0 %823
        %vm825 = vcmask 900096
        %v826 = vsel %vm825, %v820, %v822
        %v827 = vsel %vm825, %v822, %v824
        %v830 = vsel %vm514, %v826, 0.0
        %v831 = vsel %vm515, %v827, 0.0
        %s832 = scalar_lea.vmem %s1, 20
        %v833 = vld [vmem:[%s832] sm:$0xf]
        %v835 = vsel %vm350, %v833, 0
        %v838 = vsel %vm354, %v830, 0
        %v841 = vsel %vm354, %v831, 0
        %843 = vmatprep.subr.mxu0 %v841
        %844 = vmatpush1.msra.mxu0 %v838
        %845 = vmatprep.subr.mxu0 0.0
        %846 = vmatpush1.msra.mxu0 0.0
        %847 = vmatprep.subr.mxu0 0.0
        %848 = vmatpush1.msra.mxu0 0.0
        %849 = vmatprep.subr.mxu0 0.0
        %850 = vmatpush1.msra.mxu0 0.0
        %851 = vmatprep.subr.mxu0 0.0
        %852 = vmatpush1.msra.mxu0 0.0
        %853 = vmatprep.subr.mxu0 0.0
        %854 = vmatpush1.msra.mxu0 0.0
        %855 = vmatprep.subr.mxu0 0.0
        %856 = vmatpush1.msra.mxu0 0.0
        %857 = vmatprep.subr.mxu0 0.0
        %858 = vmatpush1.msra.mxu0 0.0
        %859 = vmatprep.subr.mxu0 0.0
        %860 = vmatpush1.msra.mxu0 0.0
        %861 = vmatprep.subr.mxu0 0.0
        %862 = vmatpush1.msra.mxu0 0.0
        %863 = vmatprep.subr.mxu0 0.0
        %864 = vmatpush1.msra.mxu0 0.0
        %865 = vmatprep.subr.mxu0 0.0
        %866 = vmatpush1.msra.mxu0 0.0
        %867 = vmatprep.subr.mxu0 0.0
        %868 = vmatpush1.msra.mxu0 0.0
        %869 = vmatprep.subr.mxu0 0.0
        %870 = vmatpush1.msra.mxu0 0.0
        %871 = vmatprep.subr.mxu0 0.0
        %872 = vmatpush1.msra.mxu0 0.0
        %873 = vmatprep.subr.mxu0 0.0
        %874 = vmatpush1.msra.mxu0 0.0
        %875 = vmatprep.subr.mxu0 0.0
        %876 = vmatpush1.msra.mxu0 0.0
        %877 = vmatprep.subr.mxu0 0.0
        %878 = vmatpush1.msra.mxu0 0.0
        %879 = vmatprep.subr.mxu0 0.0
        %880 = vmatpush1.msra.mxu0 0.0
        %881 = vmatprep.subr.mxu0 0.0
        %882 = vmatpush1.msra.mxu0 0.0
        %883 = vmatprep.subr.mxu0 0.0
        %884 = vmatpush1.msra.mxu0 0.0
        %885 = vmatprep.subr.mxu0 0.0
        %886 = vmatpush1.msra.mxu0 0.0
        %887 = vmatprep.subr.mxu0 0.0
        %888 = vmatpush1.msra.mxu0 0.0
        %889 = vmatprep.subr.mxu0 0.0
        %890 = vmatpush1.msra.mxu0 0.0
        %891 = vmatprep.subr.mxu0 0.0
        %892 = vmatpush1.msra.mxu0 0.0
        %893 = vmatprep.subr.mxu0 0.0
        %894 = vmatpush1.msra.mxu0 0.0
        %895 = vmatprep.subr.mxu0 0.0
        %896 = vmatpush1.msra.mxu0 0.0
        %897 = vmatprep.subr.mxu0 0.0
        %898 = vmatpush1.msra.mxu0 0.0
        %899 = vmatprep.subr.mxu0 0.0
        %900 = vmatpush1.msra.mxu0 0.0
        %901 = vmatprep.subr.mxu0 0.0
        %902 = vmatpush1.msra.mxu0 0.0
        %903 = vmatprep.subr.mxu0 0.0
        %904 = vmatpush1.msra.mxu0 0.0
        %905 = vmatprep.subr.mxu0 0.0
        %906 = vmatpush1.msra.mxu0 0.0
        %907 = vmatprep.mubr.f32.mxu0 0.0
        %908 = vmatmul.mubr.f32.gmra.mrb[0].mxu0 %v835
        %v909 = vpop.f32.mrb[0].mxu0
        %v910 = vadd.f32 0.0, %v909
        %v911 = vpop.f32.mrb[0].mxu0
        %v912 = vadd.f32 0.0, %v911
        %913 = vdwg.mxu0
        %v914 = vadd.f32 %v812, %v910
        %v915 = vadd.f32 %v813, %v912
        %v916 = vld [vmem:[#allocation2] sm:$0xff]
        %v917 = vld [vmem:[#allocation2 + $0x8] sm:$0xf]
        %v920 = vcombine.high %v916, %v916
        %921 = vrot.lane.b32.xlu0 %v916, 96
        %v922 = vpop.permute.xlu0 %921
        %923 = vrot.lane.b32.xlu0 %v920, 96
        %v924 = vpop.permute.xlu0 %923
        %925 = vrot.lane.b32.xlu0 %v917, 96
        %v926 = vpop.permute.xlu0 %925
        %vm927 = vcmask 785408
        %v928 = vsel %vm927, %v922, %v924
        %v929 = vsel %vm927, %v924, %v926
        %v932 = vsel %vm329, %v928, 0.0
        %v933 = vsel %vm330, %v929, 0.0
        %s934 = scalar_lea.vmem %s1, 24
        %v935 = vld [vmem:[%s934] sm:$0xf]
        %v937 = vsel %vm350, %v935, 0
        %v940 = vsel %vm354, %v932, 0
        %v943 = vsel %vm354, %v933, 0
        %945 = vmatprep.subr.mxu0 %v943
        %946 = vmatpush1.msra.mxu0 %v940
        %947 = vmatprep.subr.mxu0 0.0
        %948 = vmatpush1.msra.mxu0 0.0
        %949 = vmatprep.subr.mxu0 0.0
        %950 = vmatpush1.msra.mxu0 0.0
        %951 = vmatprep.subr.mxu0 0.0
        %952 = vmatpush1.msra.mxu0 0.0
        %953 = vmatprep.subr.mxu0 0.0
        %954 = vmatpush1.msra.mxu0 0.0
        %955 = vmatprep.subr.mxu0 0.0
        %956 = vmatpush1.msra.mxu0 0.0
        %957 = vmatprep.subr.mxu0 0.0
        %958 = vmatpush1.msra.mxu0 0.0
        %959 = vmatprep.subr.mxu0 0.0
        %960 = vmatpush1.msra.mxu0 0.0
        %961 = vmatprep.subr.mxu0 0.0
        %962 = vmatpush1.msra.mxu0 0.0
        %963 = vmatprep.subr.mxu0 0.0
        %964 = vmatpush1.msra.mxu0 0.0
        %965 = vmatprep.subr.mxu0 0.0
        %966 = vmatpush1.msra.mxu0 0.0
        %967 = vmatprep.subr.mxu0 0.0
        %968 = vmatpush1.msra.mxu0 0.0
        %969 = vmatprep.subr.mxu0 0.0
        %970 = vmatpush1.msra.mxu0 0.0
        %971 = vmatprep.subr.mxu0 0.0
        %972 = vmatpush1.msra.mxu0 0.0
        %973 = vmatprep.subr.mxu0 0.0
        %974 = vmatpush1.msra.mxu0 0.0
        %975 = vmatprep.subr.mxu0 0.0
        %976 = vmatpush1.msra.mxu0 0.0
        %977 = vmatprep.subr.mxu0 0.0
        %978 = vmatpush1.msra.mxu0 0.0
        %979 = vmatprep.subr.mxu0 0.0
        %980 = vmatpush1.msra.mxu0 0.0
        %981 = vmatprep.subr.mxu0 0.0
        %982 = vmatpush1.msra.mxu0 0.0
        %983 = vmatprep.subr.mxu0 0.0
        %984 = vmatpush1.msra.mxu0 0.0
        %985 = vmatprep.subr.mxu0 0.0
        %986 = vmatpush1.msra.mxu0 0.0
        %987 = vmatprep.subr.mxu0 0.0
        %988 = vmatpush1.msra.mxu0 0.0
        %989 = vmatprep.subr.mxu0 0.0
        %990 = vmatpush1.msra.mxu0 0.0
        %991 = vmatprep.subr.mxu0 0.0
        %992 = vmatpush1.msra.mxu0 0.0
        %993 = vmatprep.subr.mxu0 0.0
        %994 = vmatpush1.msra.mxu0 0.0
        %995 = vmatprep.subr.mxu0 0.0
        %996 = vmatpush1.msra.mxu0 0.0
        %997 = vmatprep.subr.mxu0 0.0
        %998 = vmatpush1.msra.mxu0 0.0
        %999 = vmatprep.subr.mxu0 0.0
        %1000 = vmatpush1.msra.mxu0 0.0
        %1001 = vmatprep.subr.mxu0 0.0
        %1002 = vmatpush1.msra.mxu0 0.0
        %1003 = vmatprep.subr.mxu0 0.0
        %1004 = vmatpush1.msra.mxu0 0.0
        %1005 = vmatprep.subr.mxu0 0.0
        %1006 = vmatpush1.msra.mxu0 0.0
        %1007 = vmatprep.subr.mxu0 0.0
        %1008 = vmatpush1.msra.mxu0 0.0
        %1009 = vmatprep.mubr.f32.mxu0 0.0
        %1010 = vmatmul.mubr.f32.gmra.mrb[0].mxu0 %v937
        %v1011 = vpop.f32.mrb[0].mxu0
        %v1012 = vadd.f32 0.0, %v1011
        %v1013 = vpop.f32.mrb[0].mxu0
        %v1014 = vadd.f32 0.0, %v1013
        %1015 = vdwg.mxu0
        %v1016 = vadd.f32 %v914, %v1012
        %v1017 = vadd.f32 %v915, %v1014
        %v1018 = vld [vmem:[#allocation2] sm:$0xff]
        %v1019 = vld [vmem:[#allocation2 + $0x8] sm:$0xf]
        %s1020 = scalar_lea.vmem %s1, 28
        %v1021 = vld [vmem:[%s1020] sm:$0xf]
        %v1024 = vcombine.high %v1018, %v1018
        %1025 = vrot.lane.b32.xlu0 %v1018, 95
        %v1026 = vpop.permute.xlu0 %1025
        %1027 = vrot.lane.b32.xlu0 %v1024, 95
        %v1028 = vpop.permute.xlu0 %1027
        %1029 = vrot.lane.b32.xlu0 %v1019, 95
        %v1030 = vpop.permute.xlu0 %1029
        %vm1031 = vcmask 777216
        %v1032 = vsel %vm1031, %v1026, %v1028
        %v1033 = vsel %vm1031, %v1028, %v1030
        %v1035 = vsel %vm350, %v1021, 0
        %v1037 = vsel %vm354, %v1032, 0
        %v1039 = vsel %vm354, %v1033, 0
        %1041 = vmatprep.subr.mxu0 %v1039
        %1042 = vmatpush1.msra.mxu0 %v1037
        %1043 = vmatprep.subr.mxu0 0.0
        %1044 = vmatpush1.msra.mxu0 0.0
        %1045 = vmatprep.subr.mxu0 0.0
        %1046 = vmatpush1.msra.mxu0 0.0
        %1047 = vmatprep.subr.mxu0 0.0
        %1048 = vmatpush1.msra.mxu0 0.0
        %1049 = vmatprep.subr.mxu0 0.0
        %1050 = vmatpush1.msra.mxu0 0.0
        %1051 = vmatprep.subr.mxu0 0.0
        %1052 = vmatpush1.msra.mxu0 0.0
        %1053 = vmatprep.subr.mxu0 0.0
        %1054 = vmatpush1.msra.mxu0 0.0
        %1055 = vmatprep.subr.mxu0 0.0
        %1056 = vmatpush1.msra.mxu0 0.0
        %1057 = vmatprep.subr.mxu0 0.0
        %1058 = vmatpush1.msra.mxu0 0.0
        %1059 = vmatprep.subr.mxu0 0.0
        %1060 = vmatpush1.msra.mxu0 0.0
        %1061 = vmatprep.subr.mxu0 0.0
        %1062 = vmatpush1.msra.mxu0 0.0
        %1063 = vmatprep.subr.mxu0 0.0
        %1064 = vmatpush1.msra.mxu0 0.0
        %1065 = vmatprep.subr.mxu0 0.0
        %1066 = vmatpush1.msra.mxu0 0.0
        %1067 = vmatprep.subr.mxu0 0.0
        %1068 = vmatpush1.msra.mxu0 0.0
        %1069 = vmatprep.subr.mxu0 0.0
        %1070 = vmatpush1.msra.mxu0 0.0
        %1071 = vmatprep.subr.mxu0 0.0
        %1072 = vmatpush1.msra.mxu0 0.0
        %1073 = vmatprep.subr.mxu0 0.0
        %1074 = vmatpush1.msra.mxu0 0.0
        %1075 = vmatprep.subr.mxu0 0.0
        %1076 = vmatpush1.msra.mxu0 0.0
        %1077 = vmatprep.subr.mxu0 0.0
        %1078 = vmatpush1.msra.mxu0 0.0
        %1079 = vmatprep.subr.mxu0 0.0
        %1080 = vmatpush1.msra.mxu0 0.0
        %1081 = vmatprep.subr.mxu0 0.0
        %1082 = vmatpush1.msra.mxu0 0.0
        %1083 = vmatprep.subr.mxu0 0.0
        %1084 = vmatpush1.msra.mxu0 0.0
        %1085 = vmatprep.subr.mxu0 0.0
        %1086 = vmatpush1.msra.mxu0 0.0
        %1087 = vmatprep.subr.mxu0 0.0
        %1088 = vmatpush1.msra.mxu0 0.0
        %1089 = vmatprep.subr.mxu0 0.0
        %1090 = vmatpush1.msra.mxu0 0.0
        %1091 = vmatprep.subr.mxu0 0.0
        %1092 = vmatpush1.msra.mxu0 0.0
        %1093 = vmatprep.subr.mxu0 0.0
        %1094 = vmatpush1.msra.mxu0 0.0
        %1095 = vmatprep.subr.mxu0 0.0
        %1096 = vmatpush1.msra.mxu0 0.0
        %1097 = vmatprep.subr.mxu0 0.0
        %1098 = vmatpush1.msra.mxu0 0.0
        %1099 = vmatprep.subr.mxu0 0.0
        %1100 = vmatpush1.msra.mxu0 0.0
        %1101 = vmatprep.subr.mxu0 0.0
        %1102 = vmatpush1.msra.mxu0 0.0
        %1103 = vmatprep.subr.mxu0 0.0
        %1104 = vmatpush1.msra.mxu0 0.0
        %1105 = vmatprep.mubr.f32.mxu0 0.0
        %1106 = vmatmul.mubr.f32.gmra.mrb[0].mxu0 %v1035
        %v1107 = vpop.f32.mrb[0].mxu0
        %v1108 = vadd.f32 0.0, %v1107
        %v1109 = vpop.f32.mrb[0].mxu0
        %v1110 = vadd.f32 0.0, %v1109
        %1111 = vdwg.mxu0
        %v1112 = vadd.f32 %v1016, %v1108
        %v1113 = vadd.f32 %v1017, %v1110
        %v1114 = vld [vmem:[#allocation2] sm:$0xff]
        %v1115 = vld [vmem:[#allocation2 + $0x8] sm:$0xf]
        %v1118 = vcombine.high %v1114, %v1114
        %1119 = vrot.lane.b32.xlu0 %v1114, 94
        %v1120 = vpop.permute.xlu0 %1119
        %1121 = vrot.lane.b32.xlu0 %v1118, 94
        %v1122 = vpop.permute.xlu0 %1121
        %1123 = vrot.lane.b32.xlu0 %v1115, 94
        %v1124 = vpop.permute.xlu0 %1123
        %vm1125 = vcmask 769024
        %v1126 = vsel %vm1125, %v1120, %v1122
        %v1127 = vsel %vm1125, %v1122, %v1124
        %v1130 = vsel %vm514, %v1126, 0.0
        %v1131 = vsel %vm515, %v1127, 0.0
        %s1132 = scalar_lea.vmem %s1, 32
        %v1133 = vld [vmem:[%s1132] sm:$0xf]
        %v1135 = vsel %vm350, %v1133, 0
        %v1138 = vsel %vm354, %v1130, 0
        %v1141 = vsel %vm354, %v1131, 0
        %1143 = vmatprep.subr.mxu0 %v1141
        %1144 = vmatpush1.msra.mxu0 %v1138
        %1145 = vmatprep.subr.mxu0 0.0
        %1146 = vmatpush1.msra.mxu0 0.0
        %1147 = vmatprep.subr.mxu0 0.0
        %1148 = vmatpush1.msra.mxu0 0.0
        %1149 = vmatprep.subr.mxu0 0.0
        %1150 = vmatpush1.msra.mxu0 0.0
        %1151 = vmatprep.subr.mxu0 0.0
        %1152 = vmatpush1.msra.mxu0 0.0
        %1153 = vmatprep.subr.mxu0 0.0
        %1154 = vmatpush1.msra.mxu0 0.0
        %1155 = vmatprep.subr.mxu0 0.0
        %1156 = vmatpush1.msra.mxu0 0.0
        %1157 = vmatprep.subr.mxu0 0.0
        %1158 = vmatpush1.msra.mxu0 0.0
        %1159 = vmatprep.subr.mxu0 0.0
        %1160 = vmatpush1.msra.mxu0 0.0
        %1161 = vmatprep.subr.mxu0 0.0
        %1162 = vmatpush1.msra.mxu0 0.0
        %1163 = vmatprep.subr.mxu0 0.0
        %1164 = vmatpush1.msra.mxu0 0.0
        %1165 = vmatprep.subr.mxu0 0.0
        %1166 = vmatpush1.msra.mxu0 0.0
        %1167 = vmatprep.subr.mxu0 0.0
        %1168 = vmatpush1.msra.mxu0 0.0
        %1169 = vmatprep.subr.mxu0 0.0
        %1170 = vmatpush1.msra.mxu0 0.0
        %1171 = vmatprep.subr.mxu0 0.0
        %1172 = vmatpush1.msra.mxu0 0.0
        %1173 = vmatprep.subr.mxu0 0.0
        %1174 = vmatpush1.msra.mxu0 0.0
        %1175 = vmatprep.subr.mxu0 0.0
        %1176 = vmatpush1.msra.mxu0 0.0
        %1177 = vmatprep.subr.mxu0 0.0
        %1178 = vmatpush1.msra.mxu0 0.0
        %1179 = vmatprep.subr.mxu0 0.0
        %1180 = vmatpush1.msra.mxu0 0.0
        %1181 = vmatprep.subr.mxu0 0.0
        %1182 = vmatpush1.msra.mxu0 0.0
        %1183 = vmatprep.subr.mxu0 0.0
        %1184 = vmatpush1.msra.mxu0 0.0
        %1185 = vmatprep.subr.mxu0 0.0
        %1186 = vmatpush1.msra.mxu0 0.0
        %1187 = vmatprep.subr.mxu0 0.0
        %1188 = vmatpush1.msra.mxu0 0.0
        %1189 = vmatprep.subr.mxu0 0.0
        %1190 = vmatpush1.msra.mxu0 0.0
        %1191 = vmatprep.subr.mxu0 0.0
        %1192 = vmatpush1.msra.mxu0 0.0
        %1193 = vmatprep.subr.mxu0 0.0
        %1194 = vmatpush1.msra.mxu0 0.0
        %1195 = vmatprep.subr.mxu0 0.0
        %1196 = vmatpush1.msra.mxu0 0.0
        %1197 = vmatprep.subr.mxu0 0.0
        %1198 = vmatpush1.msra.mxu0 0.0
        %1199 = vmatprep.subr.mxu0 0.0
        %1200 = vmatpush1.msra.mxu0 0.0
        %1201 = vmatprep.subr.mxu0 0.0
        %1202 = vmatpush1.msra.mxu0 0.0
        %1203 = vmatprep.subr.mxu0 0.0
        %1204 = vmatpush1.msra.mxu0 0.0
        %1205 = vmatprep.subr.mxu0 0.0
        %1206 = vmatpush1.msra.mxu0 0.0
        %1207 = vmatprep.mubr.f32.mxu0 0.0
        %1208 = vmatmul.mubr.f32.gmra.mrb[0].mxu0 %v1135
        %v1209 = vpop.f32.mrb[0].mxu0
        %v1210 = vadd.f32 0.0, %v1209
        %v1211 = vpop.f32.mrb[0].mxu0
        %v1212 = vadd.f32 0.0, %v1211
        %1213 = vdwg.mxu0
        %v1214 = vadd.f32 %v1112, %v1210
        %v1215 = vadd.f32 %v1113, %v1212
        %v1216 = vld [vmem:[%s3] sm:$0xf]
        %1218 = vset.pattern.permute.xlu0 0
        %1219 = vperm.xlu0 %1218, %v1216
        %v1220 = vpop.permute.xlu0 %1219
        %v1222 = vmul.f32 %v1214, %v1220
        %v1223 = vmul.f32 %v1215, %v1220
        %v1224 = vld [vmem:[%s4] sm:$0xf]
        %1226 = vset.pattern.permute.xlu0 0
        %1227 = vperm.xlu0 %1226, %v1224
        %v1228 = vpop.permute.xlu0 %1227
        %v1230 = vadd.f32 %v1222, %v1228
        %v1231 = vadd.f32 %v1223, %v1228
        %v1232 = vmax.f32 %v1230, 0.0
        %v1233 = vmax.f32 %v1231, 0.0
        %v1236 = vcombine.low %v1232, %v1233
        %1237 = vrot.lane.b32.xlu0 %v1236, 17
        %v1238 = vpop.permute.xlu0 %1237
        %v1239 = vrot.slane %v1238, 4
        %v1240 = vsel %vm317, %v1239, %v1238
        %1243 = vst.msk [vmem:[#allocation2] sm:$0xff] %vm323, %v1240
        %1244 = vst.msk [vmem:[#allocation2 + $0x8] sm:$0xf] %vm308, %v1239
        %v1245 = vld [vmem:[#allocation2] sm:$0xff]
        %v1247 = vcombine.high %v1245, %v1245
        %v1249 = vsel %vm329, %v1245, 0.0
        %v1250 = vsel %vm330, %v1247, 0.0
        %v1251 = vld [vmem:[%s2] sm:$0xf]
        %v1252 = vld [vmem:[#allocation2 + $0x8] sm:$0xf]
        %s1253 = scalar_lea.vmem %s2, 4
        %v1254 = vld [vmem:[%s1253] sm:$0xf]
        %1256 = vrot.lane.b32.xlu0 %v1245, 127
        %v1257 = vpop.permute.xlu0 %1256
        %1258 = vrot.lane.b32.xlu0 %v1247, 127
        %v1259 = vpop.permute.xlu0 %1258
        %1260 = vrot.lane.b32.xlu0 %v1252, 127
        %v1261 = vpop.permute.xlu0 %1260
        %v1262 = vsel %vm347, %v1257, %v1259
        %v1263 = vsel %vm347, %v1259, %v1261
        %v1265 = vsel %vm350, %v1254, 0
        %v1267 = vsel %vm354, %v1262, 0
        %v1269 = vsel %vm354, %v1263, 0
        %1271 = vmatprep.subr.mxu0 %v1269
        %1272 = vmatpush1.msra.mxu0 %v1267
        %1273 = vmatprep.subr.mxu0 0.0
        %1274 = vmatpush1.msra.mxu0 0.0
        %1275 = vmatprep.subr.mxu0 0.0
        %1276 = vmatpush1.msra.mxu0 0.0
        %1277 = vmatprep.subr.mxu0 0.0
        %1278 = vmatpush1.msra.mxu0 0.0
        %1279 = vmatprep.subr.mxu0 0.0
        %1280 = vmatpush1.msra.mxu0 0.0
        %1281 = vmatprep.subr.mxu0 0.0
        %1282 = vmatpush1.msra.mxu0 0.0
        %1283 = vmatprep.subr.mxu0 0.0
        %1284 = vmatpush1.msra.mxu0 0.0
        %1285 = vmatprep.subr.mxu0 0.0
        %1286 = vmatpush1.msra.mxu0 0.0
        %1287 = vmatprep.subr.mxu0 0.0
        %1288 = vmatpush1.msra.mxu0 0.0
        %1289 = vmatprep.subr.mxu0 0.0
        %1290 = vmatpush1.msra.mxu0 0.0
        %1291 = vmatprep.subr.mxu0 0.0
        %1292 = vmatpush1.msra.mxu0 0.0
        %1293 = vmatprep.subr.mxu0 0.0
        %1294 = vmatpush1.msra.mxu0 0.0
        %1295 = vmatprep.subr.mxu0 0.0
        %1296 = vmatpush1.msra.mxu0 0.0
        %1297 = vmatprep.subr.mxu0 0.0
        %1298 = vmatpush1.msra.mxu0 0.0
        %1299 = vmatprep.subr.mxu0 0.0
        %1300 = vmatpush1.msra.mxu0 0.0
        %1301 = vmatprep.subr.mxu0 0.0
        %1302 = vmatpush1.msra.mxu0 0.0
        %1303 = vmatprep.subr.mxu0 0.0
        %1304 = vmatpush1.msra.mxu0 0.0
        %1305 = vmatprep.subr.mxu0 0.0
        %1306 = vmatpush1.msra.mxu0 0.0
        %1307 = vmatprep.subr.mxu0 0.0
        %1308 = vmatpush1.msra.mxu0 0.0
        %1309 = vmatprep.subr.mxu0 0.0
        %1310 = vmatpush1.msra.mxu0 0.0
        %1311 = vmatprep.subr.mxu0 0.0
        %1312 = vmatpush1.msra.mxu0 0.0
        %1313 = vmatprep.subr.mxu0 0.0
        %1314 = vmatpush1.msra.mxu0 0.0
        %1315 = vmatprep.subr.mxu0 0.0
        %1316 = vmatpush1.msra.mxu0 0.0
        %1317 = vmatprep.subr.mxu0 0.0
        %1318 = vmatpush1.msra.mxu0 0.0
        %1319 = vmatprep.subr.mxu0 0.0
        %1320 = vmatpush1.msra.mxu0 0.0
        %1321 = vmatprep.subr.mxu0 0.0
        %1322 = vmatpush1.msra.mxu0 0.0
        %1323 = vmatprep.subr.mxu0 0.0
        %1324 = vmatpush1.msra.mxu0 0.0
        %1325 = vmatprep.subr.mxu0 0.0
        %1326 = vmatpush1.msra.mxu0 0.0
        %1327 = vmatprep.subr.mxu0 0.0
        %1328 = vmatpush1.msra.mxu0 0.0
        %1329 = vmatprep.subr.mxu0 0.0
        %1330 = vmatpush1.msra.mxu0 0.0
        %1331 = vmatprep.subr.mxu0 0.0
        %1332 = vmatpush1.msra.mxu0 0.0
        %1333 = vmatprep.subr.mxu0 0.0
        %1334 = vmatpush1.msra.mxu0 0.0
        %1335 = vmatprep.mubr.f32.mxu0 0.0
        %1336 = vmatmul.mubr.f32.gmra.mrb[0].mxu0 %v1265
        %v1337 = vpop.f32.mrb[0].mxu0
        %v1338 = vadd.f32 0.0, %v1337
        %v1339 = vpop.f32.mrb[0].mxu0
        %v1340 = vadd.f32 0.0, %v1339
        %1341 = vdwg.mxu0
        %v1343 = vsel %vm350, %v1251, 0
        %v1346 = vsel %vm354, %v1249, 0
        %v1349 = vsel %vm354, %v1250, 0
        %1351 = vmatprep.subr.mxu0 %v1349
        %1352 = vmatpush1.msra.mxu0 %v1346
        %1353 = vmatprep.subr.mxu0 0.0
        %1354 = vmatpush1.msra.mxu0 0.0
        %1355 = vmatprep.subr.mxu0 0.0
        %1356 = vmatpush1.msra.mxu0 0.0
        %1357 = vmatprep.subr.mxu0 0.0
        %1358 = vmatpush1.msra.mxu0 0.0
        %1359 = vmatprep.subr.mxu0 0.0
        %1360 = vmatpush1.msra.mxu0 0.0
        %1361 = vmatprep.subr.mxu0 0.0
        %1362 = vmatpush1.msra.mxu0 0.0
        %1363 = vmatprep.subr.mxu0 0.0
        %1364 = vmatpush1.msra.mxu0 0.0
        %1365 = vmatprep.subr.mxu0 0.0
        %1366 = vmatpush1.msra.mxu0 0.0
        %1367 = vmatprep.subr.mxu0 0.0
        %1368 = vmatpush1.msra.mxu0 0.0
        %1369 = vmatprep.subr.mxu0 0.0
        %1370 = vmatpush1.msra.mxu0 0.0
        %1371 = vmatprep.subr.mxu0 0.0
        %1372 = vmatpush1.msra.mxu0 0.0
        %1373 = vmatprep.subr.mxu0 0.0
        %1374 = vmatpush1.msra.mxu0 0.0
        %1375 = vmatprep.subr.mxu0 0.0
        %1376 = vmatpush1.msra.mxu0 0.0
        %1377 = vmatprep.subr.mxu0 0.0
        %1378 = vmatpush1.msra.mxu0 0.0
        %1379 = vmatprep.subr.mxu0 0.0
        %1380 = vmatpush1.msra.mxu0 0.0
        %1381 = vmatprep.subr.mxu0 0.0
        %1382 = vmatpush1.msra.mxu0 0.0
        %1383 = vmatprep.subr.mxu0 0.0
        %1384 = vmatpush1.msra.mxu0 0.0
        %1385 = vmatprep.subr.mxu0 0.0
        %1386 = vmatpush1.msra.mxu0 0.0
        %1387 = vmatprep.subr.mxu0 0.0
        %1388 = vmatpush1.msra.mxu0 0.0
        %1389 = vmatprep.subr.mxu0 0.0
        %1390 = vmatpush1.msra.mxu0 0.0
        %1391 = vmatprep.subr.mxu0 0.0
        %1392 = vmatpush1.msra.mxu0 0.0
        %1393 = vmatprep.subr.mxu0 0.0
        %1394 = vmatpush1.msra.mxu0 0.0
        %1395 = vmatprep.subr.mxu0 0.0
        %1396 = vmatpush1.msra.mxu0 0.0
        %1397 = vmatprep.subr.mxu0 0.0
        %1398 = vmatpush1.msra.mxu0 0.0
        %1399 = vmatprep.subr.mxu0 0.0
        %1400 = vmatpush1.msra.mxu0 0.0
        %1401 = vmatprep.subr.mxu0 0.0
        %1402 = vmatpush1.msra.mxu0 0.0
        %1403 = vmatprep.subr.mxu0 0.0
        %1404 = vmatpush1.msra.mxu0 0.0
        %1405 = vmatprep.subr.mxu0 0.0
        %1406 = vmatpush1.msra.mxu0 0.0
        %1407 = vmatprep.subr.mxu0 0.0
        %1408 = vmatpush1.msra.mxu0 0.0
        %1409 = vmatprep.subr.mxu0 0.0
        %1410 = vmatpush1.msra.mxu0 0.0
        %1411 = vmatprep.subr.mxu0 0.0
        %1412 = vmatpush1.msra.mxu0 0.0
        %1413 = vmatprep.subr.mxu0 0.0
        %1414 = vmatpush1.msra.mxu0 0.0
        %1415 = vmatprep.mubr.f32.mxu0 0.0
        %1416 = vmatmul.mubr.f32.gmra.mrb[0].mxu0 %v1343
        %v1417 = vpop.f32.mrb[0].mxu0
        %v1418 = vadd.f32 %v1338, %v1417
        %v1419 = vpop.f32.mrb[0].mxu0
        %v1420 = vadd.f32 %v1340, %v1419
        %1421 = vdwg.mxu0
        %v1422 = vld [vmem:[#allocation2] sm:$0xff]
        %v1423 = vld [vmem:[#allocation2 + $0x8] sm:$0xf]
        %v1426 = vcombine.high %v1422, %v1422
        %1427 = vrot.lane.b32.xlu0 %v1422, 126
        %v1428 = vpop.permute.xlu0 %1427
        %1429 = vrot.lane.b32.xlu0 %v1426, 126
        %v1430 = vpop.permute.xlu0 %1429
        %1431 = vrot.lane.b32.xlu0 %v1423, 126
        %v1432 = vpop.permute.xlu0 %1431
        %v1433 = vsel %vm525, %v1428, %v1430
        %v1434 = vsel %vm525, %v1430, %v1432
        %v1437 = vsel %vm514, %v1433, 0.0
        %v1438 = vsel %vm515, %v1434, 0.0
        %s1439 = scalar_lea.vmem %s2, 8
        %v1440 = vld [vmem:[%s1439] sm:$0xf]
        %v1442 = vsel %vm350, %v1440, 0
        %v1445 = vsel %vm354, %v1437, 0
        %v1448 = vsel %vm354, %v1438, 0
        %1450 = vmatprep.subr.mxu0 %v1448
        %1451 = vmatpush1.msra.mxu0 %v1445
        %1452 = vmatprep.subr.mxu0 0.0
        %1453 = vmatpush1.msra.mxu0 0.0
        %1454 = vmatprep.subr.mxu0 0.0
        %1455 = vmatpush1.msra.mxu0 0.0
        %1456 = vmatprep.subr.mxu0 0.0
        %1457 = vmatpush1.msra.mxu0 0.0
        %1458 = vmatprep.subr.mxu0 0.0
        %1459 = vmatpush1.msra.mxu0 0.0
        %1460 = vmatprep.subr.mxu0 0.0
        %1461 = vmatpush1.msra.mxu0 0.0
        %1462 = vmatprep.subr.mxu0 0.0
        %1463 = vmatpush1.msra.mxu0 0.0
        %1464 = vmatprep.subr.mxu0 0.0
        %1465 = vmatpush1.msra.mxu0 0.0
        %1466 = vmatprep.subr.mxu0 0.0
        %1467 = vmatpush1.msra.mxu0 0.0
        %1468 = vmatprep.subr.mxu0 0.0
        %1469 = vmatpush1.msra.mxu0 0.0
        %1470 = vmatprep.subr.mxu0 0.0
        %1471 = vmatpush1.msra.mxu0 0.0
        %1472 = vmatprep.subr.mxu0 0.0
        %1473 = vmatpush1.msra.mxu0 0.0
        %1474 = vmatprep.subr.mxu0 0.0
        %1475 = vmatpush1.msra.mxu0 0.0
        %1476 = vmatprep.subr.mxu0 0.0
        %1477 = vmatpush1.msra.mxu0 0.0
        %1478 = vmatprep.subr.mxu0 0.0
        %1479 = vmatpush1.msra.mxu0 0.0
        %1480 = vmatprep.subr.mxu0 0.0
        %1481 = vmatpush1.msra.mxu0 0.0
        %1482 = vmatprep.subr.mxu0 0.0
        %1483 = vmatpush1.msra.mxu0 0.0
        %1484 = vmatprep.subr.mxu0 0.0
        %1485 = vmatpush1.msra.mxu0 0.0
        %1486 = vmatprep.subr.mxu0 0.0
        %1487 = vmatpush1.msra.mxu0 0.0
        %1488 = vmatprep.subr.mxu0 0.0
        %1489 = vmatpush1.msra.mxu0 0.0
        %1490 = vmatprep.subr.mxu0 0.0
        %1491 = vmatpush1.msra.mxu0 0.0
        %1492 = vmatprep.subr.mxu0 0.0
        %1493 = vmatpush1.msra.mxu0 0.0
        %1494 = vmatprep.subr.mxu0 0.0
        %1495 = vmatpush1.msra.mxu0 0.0
        %1496 = vmatprep.subr.mxu0 0.0
        %1497 = vmatpush1.msra.mxu0 0.0
        %1498 = vmatprep.subr.mxu0 0.0
        %1499 = vmatpush1.msra.mxu0 0.0
        %1500 = vmatprep.subr.mxu0 0.0
        %1501 = vmatpush1.msra.mxu0 0.0
        %1502 = vmatprep.subr.mxu0 0.0
        %1503 = vmatpush1.msra.mxu0 0.0
        %1504 = vmatprep.subr.mxu0 0.0
        %1505 = vmatpush1.msra.mxu0 0.0
        %1506 = vmatprep.subr.mxu0 0.0
        %1507 = vmatpush1.msra.mxu0 0.0
        %1508 = vmatprep.subr.mxu0 0.0
        %1509 = vmatpush1.msra.mxu0 0.0
        %1510 = vmatprep.subr.mxu0 0.0
        %1511 = vmatpush1.msra.mxu0 0.0
        %1512 = vmatprep.subr.mxu0 0.0
        %1513 = vmatpush1.msra.mxu0 0.0
        %1514 = vmatprep.mubr.f32.mxu0 0.0
        %1515 = vmatmul.mubr.f32.gmra.mrb[0].mxu0 %v1442
        %v1516 = vpop.f32.mrb[0].mxu0
        %v1517 = vadd.f32 0.0, %v1516
        %v1518 = vpop.f32.mrb[0].mxu0
        %v1519 = vadd.f32 0.0, %v1518
        %1520 = vdwg.mxu0
        %v1521 = vadd.f32 %v1418, %v1517
        %v1522 = vadd.f32 %v1420, %v1519
        %v1523 = vld [vmem:[#allocation2] sm:$0xff]
        %v1524 = vld [vmem:[#allocation2 + $0x8] sm:$0xf]
        %v1527 = vcombine.high %v1523, %v1523
        %1528 = vrot.lane.b32.xlu0 %v1523, 112
        %v1529 = vpop.permute.xlu0 %1528
        %1530 = vrot.lane.b32.xlu0 %v1527, 112
        %v1531 = vpop.permute.xlu0 %1530
        %1532 = vrot.lane.b32.xlu0 %v1524, 112
        %v1533 = vpop.permute.xlu0 %1532
        %v1534 = vsel %vm627, %v1529, %v1531
        %v1535 = vsel %vm627, %v1531, %v1533
        %v1538 = vsel %vm329, %v1534, 0.0
        %v1539 = vsel %vm330, %v1535, 0.0
        %s1540 = scalar_lea.vmem %s2, 12
        %v1541 = vld [vmem:[%s1540] sm:$0xf]
        %v1543 = vsel %vm350, %v1541, 0
        %v1546 = vsel %vm354, %v1538, 0
        %v1549 = vsel %vm354, %v1539, 0
        %1551 = vmatprep.subr.mxu0 %v1549
        %1552 = vmatpush1.msra.mxu0 %v1546
        %1553 = vmatprep.subr.mxu0 0.0
        %1554 = vmatpush1.msra.mxu0 0.0
        %1555 = vmatprep.subr.mxu0 0.0
        %1556 = vmatpush1.msra.mxu0 0.0
        %1557 = vmatprep.subr.mxu0 0.0
        %1558 = vmatpush1.msra.mxu0 0.0
        %1559 = vmatprep.subr.mxu0 0.0
        %1560 = vmatpush1.msra.mxu0 0.0
        %1561 = vmatprep.subr.mxu0 0.0
        %1562 = vmatpush1.msra.mxu0 0.0
        %1563 = vmatprep.subr.mxu0 0.0
        %1564 = vmatpush1.msra.mxu0 0.0
        %1565 = vmatprep.subr.mxu0 0.0
        %1566 = vmatpush1.msra.mxu0 0.0
        %1567 = vmatprep.subr.mxu0 0.0
        %1568 = vmatpush1.msra.mxu0 0.0
        %1569 = vmatprep.subr.mxu0 0.0
        %1570 = vmatpush1.msra.mxu0 0.0
        %1571 = vmatprep.subr.mxu0 0.0
        %1572 = vmatpush1.msra.mxu0 0.0
        %1573 = vmatprep.subr.mxu0 0.0
        %1574 = vmatpush1.msra.mxu0 0.0
        %1575 = vmatprep.subr.mxu0 0.0
        %1576 = vmatpush1.msra.mxu0 0.0
        %1577 = vmatprep.subr.mxu0 0.0
        %1578 = vmatpush1.msra.mxu0 0.0
        %1579 = vmatprep.subr.mxu0 0.0
        %1580 = vmatpush1.msra.mxu0 0.0
        %1581 = vmatprep.subr.mxu0 0.0
        %1582 = vmatpush1.msra.mxu0 0.0
        %1583 = vmatprep.subr.mxu0 0.0
        %1584 = vmatpush1.msra.mxu0 0.0
        %1585 = vmatprep.subr.mxu0 0.0
        %1586 = vmatpush1.msra.mxu0 0.0
        %1587 = vmatprep.subr.mxu0 0.0
        %1588 = vmatpush1.msra.mxu0 0.0
        %1589 = vmatprep.subr.mxu0 0.0
        %1590 = vmatpush1.msra.mxu0 0.0
        %1591 = vmatprep.subr.mxu0 0.0
        %1592 = vmatpush1.msra.mxu0 0.0
        %1593 = vmatprep.subr.mxu0 0.0
        %1594 = vmatpush1.msra.mxu0 0.0
        %1595 = vmatprep.subr.mxu0 0.0
        %1596 = vmatpush1.msra.mxu0 0.0
        %1597 = vmatprep.subr.mxu0 0.0
        %1598 = vmatpush1.msra.mxu0 0.0
        %1599 = vmatprep.subr.mxu0 0.0
        %1600 = vmatpush1.msra.mxu0 0.0
        %1601 = vmatprep.subr.mxu0 0.0
        %1602 = vmatpush1.msra.mxu0 0.0
        %1603 = vmatprep.subr.mxu0 0.0
        %1604 = vmatpush1.msra.mxu0 0.0
        %1605 = vmatprep.subr.mxu0 0.0
        %1606 = vmatpush1.msra.mxu0 0.0
        %1607 = vmatprep.subr.mxu0 0.0
        %1608 = vmatpush1.msra.mxu0 0.0
        %1609 = vmatprep.subr.mxu0 0.0
        %1610 = vmatpush1.msra.mxu0 0.0
        %1611 = vmatprep.subr.mxu0 0.0
        %1612 = vmatpush1.msra.mxu0 0.0
        %1613 = vmatprep.subr.mxu0 0.0
        %1614 = vmatpush1.msra.mxu0 0.0
        %1615 = vmatprep.mubr.f32.mxu0 0.0
        %1616 = vmatmul.mubr.f32.gmra.mrb[0].mxu0 %v1543
        %v1617 = vpop.f32.mrb[0].mxu0
        %v1618 = vadd.f32 0.0, %v1617
        %v1619 = vpop.f32.mrb[0].mxu0
        %v1620 = vadd.f32 0.0, %v1619
        %1621 = vdwg.mxu0
        %v1622 = vadd.f32 %v1521, %v1618
        %v1623 = vadd.f32 %v1522, %v1620
        %v1624 = vld [vmem:[#allocation2] sm:$0xff]
        %v1625 = vld [vmem:[#allocation2 + $0x8] sm:$0xf]
        %s1626 = scalar_lea.vmem %s2, 16
        %v1627 = vld [vmem:[%s1626] sm:$0xf]
        %v1630 = vcombine.high %v1624, %v1624
        %1631 = vrot.lane.b32.xlu0 %v1624, 111
        %v1632 = vpop.permute.xlu0 %1631
        %1633 = vrot.lane.b32.xlu0 %v1630, 111
        %v1634 = vpop.permute.xlu0 %1633
        %1635 = vrot.lane.b32.xlu0 %v1625, 111
        %v1636 = vpop.permute.xlu0 %1635
        %v1637 = vsel %vm731, %v1632, %v1634
        %v1638 = vsel %vm731, %v1634, %v1636
        %v1640 = vsel %vm350, %v1627, 0
        %v1642 = vsel %vm354, %v1637, 0
        %v1644 = vsel %vm354, %v1638, 0
        %1646 = vmatprep.subr.mxu0 %v1644
        %1647 = vmatpush1.msra.mxu0 %v1642
        %1648 = vmatprep.subr.mxu0 0.0
        %1649 = vmatpush1.msra.mxu0 0.0
        %1650 = vmatprep.subr.mxu0 0.0
        %1651 = vmatpush1.msra.mxu0 0.0
        %1652 = vmatprep.subr.mxu0 0.0
        %1653 = vmatpush1.msra.mxu0 0.0
        %1654 = vmatprep.subr.mxu0 0.0
        %1655 = vmatpush1.msra.mxu0 0.0
        %1656 = vmatprep.subr.mxu0 0.0
        %1657 = vmatpush1.msra.mxu0 0.0
        %1658 = vmatprep.subr.mxu0 0.0
        %1659 = vmatpush1.msra.mxu0 0.0
        %1660 = vmatprep.subr.mxu0 0.0
        %1661 = vmatpush1.msra.mxu0 0.0
        %1662 = vmatprep.subr.mxu0 0.0
        %1663 = vmatpush1.msra.mxu0 0.0
        %1664 = vmatprep.subr.mxu0 0.0
        %1665 = vmatpush1.msra.mxu0 0.0
        %1666 = vmatprep.subr.mxu0 0.0
        %1667 = vmatpush1.msra.mxu0 0.0
        %1668 = vmatprep.subr.mxu0 0.0
        %1669 = vmatpush1.msra.mxu0 0.0
        %1670 = vmatprep.subr.mxu0 0.0
        %1671 = vmatpush1.msra.mxu0 0.0
        %1672 = vmatprep.subr.mxu0 0.0
        %1673 = vmatpush1.msra.mxu0 0.0
        %1674 = vmatprep.subr.mxu0 0.0
        %1675 = vmatpush1.msra.mxu0 0.0
        %1676 = vmatprep.subr.mxu0 0.0
        %1677 = vmatpush1.msra.mxu0 0.0
        %1678 = vmatprep.subr.mxu0 0.0
        %1679 = vmatpush1.msra.mxu0 0.0
        %1680 = vmatprep.subr.mxu0 0.0
        %1681 = vmatpush1.msra.mxu0 0.0
        %1682 = vmatprep.subr.mxu0 0.0
        %1683 = vmatpush1.msra.mxu0 0.0
        %1684 = vmatprep.subr.mxu0 0.0
        %1685 = vmatpush1.msra.mxu0 0.0
        %1686 = vmatprep.subr.mxu0 0.0
        %1687 = vmatpush1.msra.mxu0 0.0
        %1688 = vmatprep.subr.mxu0 0.0
        %1689 = vmatpush1.msra.mxu0 0.0
        %1690 = vmatprep.subr.mxu0 0.0
        %1691 = vmatpush1.msra.mxu0 0.0
        %1692 = vmatprep.subr.mxu0 0.0
        %1693 = vmatpush1.msra.mxu0 0.0
        %1694 = vmatprep.subr.mxu0 0.0
        %1695 = vmatpush1.msra.mxu0 0.0
        %1696 = vmatprep.subr.mxu0 0.0
        %1697 = vmatpush1.msra.mxu0 0.0
        %1698 = vmatprep.subr.mxu0 0.0
        %1699 = vmatpush1.msra.mxu0 0.0
        %1700 = vmatprep.subr.mxu0 0.0
        %1701 = vmatpush1.msra.mxu0 0.0
        %1702 = vmatprep.subr.mxu0 0.0
        %1703 = vmatpush1.msra.mxu0 0.0
        %1704 = vmatprep.subr.mxu0 0.0
        %1705 = vmatpush1.msra.mxu0 0.0
        %1706 = vmatprep.subr.mxu0 0.0
        %1707 = vmatpush1.msra.mxu0 0.0
        %1708 = vmatprep.subr.mxu0 0.0
        %1709 = vmatpush1.msra.mxu0 0.0
        %1710 = vmatprep.mubr.f32.mxu0 0.0
        %1711 = vmatmul.mubr.f32.gmra.mrb[0].mxu0 %v1640
        %v1712 = vpop.f32.mrb[0].mxu0
        %v1713 = vadd.f32 0.0, %v1712
        %v1714 = vpop.f32.mrb[0].mxu0
        %v1715 = vadd.f32 0.0, %v1714
        %1716 = vdwg.mxu0
        %v1717 = vadd.f32 %v1622, %v1713
        %v1718 = vadd.f32 %v1623, %v1715
        %v1719 = vld [vmem:[#allocation2] sm:$0xff]
        %v1720 = vld [vmem:[#allocation2 + $0x8] sm:$0xf]
        %v1723 = vcombine.high %v1719, %v1719
        %1724 = vrot.lane.b32.xlu0 %v1719, 110
        %v1725 = vpop.permute.xlu0 %1724
        %1726 = vrot.lane.b32.xlu0 %v1723, 110
        %v1727 = vpop.permute.xlu0 %1726
        %1728 = vrot.lane.b32.xlu0 %v1720, 110
        %v1729 = vpop.permute.xlu0 %1728
        %v1730 = vsel %vm825, %v1725, %v1727
        %v1731 = vsel %vm825, %v1727, %v1729
        %v1734 = vsel %vm514, %v1730, 0.0
        %v1735 = vsel %vm515, %v1731, 0.0
        %s1736 = scalar_lea.vmem %s2, 20
        %v1737 = vld [vmem:[%s1736] sm:$0xf]
        %v1739 = vsel %vm350, %v1737, 0
        %v1742 = vsel %vm354, %v1734, 0
        %v1745 = vsel %vm354, %v1735, 0
        %1747 = vmatprep.subr.mxu0 %v1745
        %1748 = vmatpush1.msra.mxu0 %v1742
        %1749 = vmatprep.subr.mxu0 0.0
        %1750 = vmatpush1.msra.mxu0 0.0
        %1751 = vmatprep.subr.mxu0 0.0
        %1752 = vmatpush1.msra.mxu0 0.0
        %1753 = vmatprep.subr.mxu0 0.0
        %1754 = vmatpush1.msra.mxu0 0.0
        %1755 = vmatprep.subr.mxu0 0.0
        %1756 = vmatpush1.msra.mxu0 0.0
        %1757 = vmatprep.subr.mxu0 0.0
        %1758 = vmatpush1.msra.mxu0 0.0
        %1759 = vmatprep.subr.mxu0 0.0
        %1760 = vmatpush1.msra.mxu0 0.0
        %1761 = vmatprep.subr.mxu0 0.0
        %1762 = vmatpush1.msra.mxu0 0.0
        %1763 = vmatprep.subr.mxu0 0.0
        %1764 = vmatpush1.msra.mxu0 0.0
        %1765 = vmatprep.subr.mxu0 0.0
        %1766 = vmatpush1.msra.mxu0 0.0
        %1767 = vmatprep.subr.mxu0 0.0
        %1768 = vmatpush1.msra.mxu0 0.0
        %1769 = vmatprep.subr.mxu0 0.0
        %1770 = vmatpush1.msra.mxu0 0.0
        %1771 = vmatprep.subr.mxu0 0.0
        %1772 = vmatpush1.msra.mxu0 0.0
        %1773 = vmatprep.subr.mxu0 0.0
        %1774 = vmatpush1.msra.mxu0 0.0
        %1775 = vmatprep.subr.mxu0 0.0
        %1776 = vmatpush1.msra.mxu0 0.0
        %1777 = vmatprep.subr.mxu0 0.0
        %1778 = vmatpush1.msra.mxu0 0.0
        %1779 = vmatprep.subr.mxu0 0.0
        %1780 = vmatpush1.msra.mxu0 0.0
        %1781 = vmatprep.subr.mxu0 0.0
        %1782 = vmatpush1.msra.mxu0 0.0
        %1783 = vmatprep.subr.mxu0 0.0
        %1784 = vmatpush1.msra.mxu0 0.0
        %1785 = vmatprep.subr.mxu0 0.0
        %1786 = vmatpush1.msra.mxu0 0.0
        %1787 = vmatprep.subr.mxu0 0.0
        %1788 = vmatpush1.msra.mxu0 0.0
        %1789 = vmatprep.subr.mxu0 0.0
        %1790 = vmatpush1.msra.mxu0 0.0
        %1791 = vmatprep.subr.mxu0 0.0
        %1792 = vmatpush1.msra.mxu0 0.0
        %1793 = vmatprep.subr.mxu0 0.0
        %1794 = vmatpush1.msra.mxu0 0.0
        %1795 = vmatprep.subr.mxu0 0.0
        %1796 = vmatpush1.msra.mxu0 0.0
        %1797 = vmatprep.subr.mxu0 0.0
        %1798 = vmatpush1.msra.mxu0 0.0
        %1799 = vmatprep.subr.mxu0 0.0
        %1800 = vmatpush1.msra.mxu0 0.0
        %1801 = vmatprep.subr.mxu0 0.0
        %1802 = vmatpush1.msra.mxu0 0.0
        %1803 = vmatprep.subr.mxu0 0.0
        %1804 = vmatpush1.msra.mxu0 0.0
        %1805 = vmatprep.subr.mxu0 0.0
        %1806 = vmatpush1.msra.mxu0 0.0
        %1807 = vmatprep.subr.mxu0 0.0
        %1808 = vmatpush1.msra.mxu0 0.0
        %1809 = vmatprep.subr.mxu0 0.0
        %1810 = vmatpush1.msra.mxu0 0.0
        %1811 = vmatprep.mubr.f32.mxu0 0.0
        %1812 = vmatmul.mubr.f32.gmra.mrb[0].mxu0 %v1739
        %v1813 = vpop.f32.mrb[0].mxu0
        %v1814 = vadd.f32 0.0, %v1813
        %v1815 = vpop.f32.mrb[0].mxu0
        %v1816 = vadd.f32 0.0, %v1815
        %1817 = vdwg.mxu0
        %v1818 = vadd.f32 %v1717, %v1814
        %v1819 = vadd.f32 %v1718, %v1816
        %v1820 = vld [vmem:[#allocation2] sm:$0xff]
        %v1821 = vld [vmem:[#allocation2 + $0x8] sm:$0xf]
        %v1824 = vcombine.high %v1820, %v1820
        %1825 = vrot.lane.b32.xlu0 %v1820, 96
        %v1826 = vpop.permute.xlu0 %1825
        %1827 = vrot.lane.b32.xlu0 %v1824, 96
        %v1828 = vpop.permute.xlu0 %1827
        %1829 = vrot.lane.b32.xlu0 %v1821, 96
        %v1830 = vpop.permute.xlu0 %1829
        %v1831 = vsel %vm927, %v1826, %v1828
        %v1832 = vsel %vm927, %v1828, %v1830
        %v1835 = vsel %vm329, %v1831, 0.0
        %v1836 = vsel %vm330, %v1832, 0.0
        %s1837 = scalar_lea.vmem %s2, 24
        %v1838 = vld [vmem:[%s1837] sm:$0xf]
        %v1840 = vsel %vm350, %v1838, 0
        %v1843 = vsel %vm354, %v1835, 0
        %v1846 = vsel %vm354, %v1836, 0
        %1848 = vmatprep.subr.mxu0 %v1846
        %1849 = vmatpush1.msra.mxu0 %v1843
        %1850 = vmatprep.subr.mxu0 0.0
        %1851 = vmatpush1.msra.mxu0 0.0
        %1852 = vmatprep.subr.mxu0 0.0
        %1853 = vmatpush1.msra.mxu0 0.0
        %1854 = vmatprep.subr.mxu0 0.0
        %1855 = vmatpush1.msra.mxu0 0.0
        %1856 = vmatprep.subr.mxu0 0.0
        %1857 = vmatpush1.msra.mxu0 0.0
        %1858 = vmatprep.subr.mxu0 0.0
        %1859 = vmatpush1.msra.mxu0 0.0
        %1860 = vmatprep.subr.mxu0 0.0
        %1861 = vmatpush1.msra.mxu0 0.0
        %1862 = vmatprep.subr.mxu0 0.0
        %1863 = vmatpush1.msra.mxu0 0.0
        %1864 = vmatprep.subr.mxu0 0.0
        %1865 = vmatpush1.msra.mxu0 0.0
        %1866 = vmatprep.subr.mxu0 0.0
        %1867 = vmatpush1.msra.mxu0 0.0
        %1868 = vmatprep.subr.mxu0 0.0
        %1869 = vmatpush1.msra.mxu0 0.0
        %1870 = vmatprep.subr.mxu0 0.0
        %1871 = vmatpush1.msra.mxu0 0.0
        %1872 = vmatprep.subr.mxu0 0.0
        %1873 = vmatpush1.msra.mxu0 0.0
        %1874 = vmatprep.subr.mxu0 0.0
        %1875 = vmatpush1.msra.mxu0 0.0
        %1876 = vmatprep.subr.mxu0 0.0
        %1877 = vmatpush1.msra.mxu0 0.0
        %1878 = vmatprep.subr.mxu0 0.0
        %1879 = vmatpush1.msra.mxu0 0.0
        %1880 = vmatprep.subr.mxu0 0.0
        %1881 = vmatpush1.msra.mxu0 0.0
        %1882 = vmatprep.subr.mxu0 0.0
        %1883 = vmatpush1.msra.mxu0 0.0
        %1884 = vmatprep.subr.mxu0 0.0
        %1885 = vmatpush1.msra.mxu0 0.0
        %1886 = vmatprep.subr.mxu0 0.0
        %1887 = vmatpush1.msra.mxu0 0.0
        %1888 = vmatprep.subr.mxu0 0.0
        %1889 = vmatpush1.msra.mxu0 0.0
        %1890 = vmatprep.subr.mxu0 0.0
        %1891 = vmatpush1.msra.mxu0 0.0
        %1892 = vmatprep.subr.mxu0 0.0
        %1893 = vmatpush1.msra.mxu0 0.0
        %1894 = vmatprep.subr.mxu0 0.0
        %1895 = vmatpush1.msra.mxu0 0.0
        %1896 = vmatprep.subr.mxu0 0.0
        %1897 = vmatpush1.msra.mxu0 0.0
        %1898 = vmatprep.subr.mxu0 0.0
        %1899 = vmatpush1.msra.mxu0 0.0
        %1900 = vmatprep.subr.mxu0 0.0
        %1901 = vmatpush1.msra.mxu0 0.0
        %1902 = vmatprep.subr.mxu0 0.0
        %1903 = vmatpush1.msra.mxu0 0.0
        %1904 = vmatprep.subr.mxu0 0.0
        %1905 = vmatpush1.msra.mxu0 0.0
        %1906 = vmatprep.subr.mxu0 0.0
        %1907 = vmatpush1.msra.mxu0 0.0
        %1908 = vmatprep.subr.mxu0 0.0
        %1909 = vmatpush1.msra.mxu0 0.0
        %1910 = vmatprep.subr.mxu0 0.0
        %1911 = vmatpush1.msra.mxu0 0.0
        %1912 = vmatprep.mubr.f32.mxu0 0.0
        %1913 = vmatmul.mubr.f32.gmra.mrb[0].mxu0 %v1840
        %v1914 = vpop.f32.mrb[0].mxu0
        %v1915 = vadd.f32 0.0, %v1914
        %v1916 = vpop.f32.mrb[0].mxu0
        %v1917 = vadd.f32 0.0, %v1916
        %1918 = vdwg.mxu0
        %v1919 = vadd.f32 %v1818, %v1915
        %v1920 = vadd.f32 %v1819, %v1917
        %v1921 = vld [vmem:[#allocation2] sm:$0xff]
        %v1922 = vld [vmem:[#allocation2 + $0x8] sm:$0xf]
        %s1923 = scalar_lea.vmem %s2, 28
        %v1924 = vld [vmem:[%s1923] sm:$0xf]
        %v1927 = vcombine.high %v1921, %v1921
        %1928 = vrot.lane.b32.xlu0 %v1921, 95
        %v1929 = vpop.permute.xlu0 %1928
        %1930 = vrot.lane.b32.xlu0 %v1927, 95
        %v1931 = vpop.permute.xlu0 %1930
        %1932 = vrot.lane.b32.xlu0 %v1922, 95
        %v1933 = vpop.permute.xlu0 %1932
        %v1934 = vsel %vm1031, %v1929, %v1931
        %v1935 = vsel %vm1031, %v1931, %v1933
        %v1937 = vsel %vm350, %v1924, 0
        %v1939 = vsel %vm354, %v1934, 0
        %v1941 = vsel %vm354, %v1935, 0
        %1943 = vmatprep.subr.mxu0 %v1941
        %1944 = vmatpush1.msra.mxu0 %v1939
        %1945 = vmatprep.subr.mxu0 0.0
        %1946 = vmatpush1.msra.mxu0 0.0
        %1947 = vmatprep.subr.mxu0 0.0
        %1948 = vmatpush1.msra.mxu0 0.0
        %1949 = vmatprep.subr.mxu0 0.0
        %1950 = vmatpush1.msra.mxu0 0.0
        %1951 = vmatprep.subr.mxu0 0.0
        %1952 = vmatpush1.msra.mxu0 0.0
        %1953 = vmatprep.subr.mxu0 0.0
        %1954 = vmatpush1.msra.mxu0 0.0
        %1955 = vmatprep.subr.mxu0 0.0
        %1956 = vmatpush1.msra.mxu0 0.0
        %1957 = vmatprep.subr.mxu0 0.0
        %1958 = vmatpush1.msra.mxu0 0.0
        %1959 = vmatprep.subr.mxu0 0.0
        %1960 = vmatpush1.msra.mxu0 0.0
        %1961 = vmatprep.subr.mxu0 0.0
        %1962 = vmatpush1.msra.mxu0 0.0
        %1963 = vmatprep.subr.mxu0 0.0
        %1964 = vmatpush1.msra.mxu0 0.0
        %1965 = vmatprep.subr.mxu0 0.0
        %1966 = vmatpush1.msra.mxu0 0.0
        %1967 = vmatprep.subr.mxu0 0.0
        %1968 = vmatpush1.msra.mxu0 0.0
        %1969 = vmatprep.subr.mxu0 0.0
        %1970 = vmatpush1.msra.mxu0 0.0
        %1971 = vmatprep.subr.mxu0 0.0
        %1972 = vmatpush1.msra.mxu0 0.0
        %1973 = vmatprep.subr.mxu0 0.0
        %1974 = vmatpush1.msra.mxu0 0.0
        %1975 = vmatprep.subr.mxu0 0.0
        %1976 = vmatpush1.msra.mxu0 0.0
        %1977 = vmatprep.subr.mxu0 0.0
        %1978 = vmatpush1.msra.mxu0 0.0
        %1979 = vmatprep.subr.mxu0 0.0
        %1980 = vmatpush1.msra.mxu0 0.0
        %1981 = vmatprep.subr.mxu0 0.0
        %1982 = vmatpush1.msra.mxu0 0.0
        %1983 = vmatprep.subr.mxu0 0.0
        %1984 = vmatpush1.msra.mxu0 0.0
        %1985 = vmatprep.subr.mxu0 0.0
        %1986 = vmatpush1.msra.mxu0 0.0
        %1987 = vmatprep.subr.mxu0 0.0
        %1988 = vmatpush1.msra.mxu0 0.0
        %1989 = vmatprep.subr.mxu0 0.0
        %1990 = vmatpush1.msra.mxu0 0.0
        %1991 = vmatprep.subr.mxu0 0.0
        %1992 = vmatpush1.msra.mxu0 0.0
        %1993 = vmatprep.subr.mxu0 0.0
        %1994 = vmatpush1.msra.mxu0 0.0
        %1995 = vmatprep.subr.mxu0 0.0
        %1996 = vmatpush1.msra.mxu0 0.0
        %1997 = vmatprep.subr.mxu0 0.0
        %1998 = vmatpush1.msra.mxu0 0.0
        %1999 = vmatprep.subr.mxu0 0.0
        %2000 = vmatpush1.msra.mxu0 0.0
        %2001 = vmatprep.subr.mxu0 0.0
        %2002 = vmatpush1.msra.mxu0 0.0
        %2003 = vmatprep.subr.mxu0 0.0
        %2004 = vmatpush1.msra.mxu0 0.0
        %2005 = vmatprep.subr.mxu0 0.0
        %2006 = vmatpush1.msra.mxu0 0.0
        %2007 = vmatprep.mubr.f32.mxu0 0.0
        %2008 = vmatmul.mubr.f32.gmra.mrb[0].mxu0 %v1937
        %v2009 = vpop.f32.mrb[0].mxu0
        %v2010 = vadd.f32 0.0, %v2009
        %v2011 = vpop.f32.mrb[0].mxu0
        %v2012 = vadd.f32 0.0, %v2011
        %2013 = vdwg.mxu0
        %v2014 = vadd.f32 %v1919, %v2010
        %v2015 = vadd.f32 %v1920, %v2012
        %v2016 = vld [vmem:[#allocation2] sm:$0xff]
        %v2017 = vld [vmem:[#allocation2 + $0x8] sm:$0xf]
        %v2020 = vcombine.high %v2016, %v2016
        %2021 = vrot.lane.b32.xlu0 %v2016, 94
        %v2022 = vpop.permute.xlu0 %2021
        %2023 = vrot.lane.b32.xlu0 %v2020, 94
        %v2024 = vpop.permute.xlu0 %2023
        %2025 = vrot.lane.b32.xlu0 %v2017, 94
        %v2026 = vpop.permute.xlu0 %2025
        %v2027 = vsel %vm1125, %v2022, %v2024
        %v2028 = vsel %vm1125, %v2024, %v2026
        %v2031 = vsel %vm514, %v2027, 0.0
        %v2032 = vsel %vm515, %v2028, 0.0
        %s2033 = scalar_lea.vmem %s2, 32
        %v2034 = vld [vmem:[%s2033] sm:$0xf]
        %v2036 = vsel %vm350, %v2034, 0
        %v2039 = vsel %vm354, %v2031, 0
        %v2042 = vsel %vm354, %v2032, 0
        %2044 = vmatprep.subr.mxu0 %v2042
        %2045 = vmatpush1.msra.mxu0 %v2039
        %2046 = vmatprep.subr.mxu0 0.0
        %2047 = vmatpush1.msra.mxu0 0.0
        %2048 = vmatprep.subr.mxu0 0.0
        %2049 = vmatpush1.msra.mxu0 0.0
        %2050 = vmatprep.subr.mxu0 0.0
        %2051 = vmatpush1.msra.mxu0 0.0
        %2052 = vmatprep.subr.mxu0 0.0
        %2053 = vmatpush1.msra.mxu0 0.0
        %2054 = vmatprep.subr.mxu0 0.0
        %2055 = vmatpush1.msra.mxu0 0.0
        %2056 = vmatprep.subr.mxu0 0.0
        %2057 = vmatpush1.msra.mxu0 0.0
        %2058 = vmatprep.subr.mxu0 0.0
        %2059 = vmatpush1.msra.mxu0 0.0
        %2060 = vmatprep.subr.mxu0 0.0
        %2061 = vmatpush1.msra.mxu0 0.0
        %2062 = vmatprep.subr.mxu0 0.0
        %2063 = vmatpush1.msra.mxu0 0.0
        %2064 = vmatprep.subr.mxu0 0.0
        %2065 = vmatpush1.msra.mxu0 0.0
        %2066 = vmatprep.subr.mxu0 0.0
        %2067 = vmatpush1.msra.mxu0 0.0
        %2068 = vmatprep.subr.mxu0 0.0
        %2069 = vmatpush1.msra.mxu0 0.0
        %2070 = vmatprep.subr.mxu0 0.0
        %2071 = vmatpush1.msra.mxu0 0.0
        %2072 = vmatprep.subr.mxu0 0.0
        %2073 = vmatpush1.msra.mxu0 0.0
        %2074 = vmatprep.subr.mxu0 0.0
        %2075 = vmatpush1.msra.mxu0 0.0
        %2076 = vmatprep.subr.mxu0 0.0
        %2077 = vmatpush1.msra.mxu0 0.0
        %2078 = vmatprep.subr.mxu0 0.0
        %2079 = vmatpush1.msra.mxu0 0.0
        %2080 = vmatprep.subr.mxu0 0.0
        %2081 = vmatpush1.msra.mxu0 0.0
        %2082 = vmatprep.subr.mxu0 0.0
        %2083 = vmatpush1.msra.mxu0 0.0
        %2084 = vmatprep.subr.mxu0 0.0
        %2085 = vmatpush1.msra.mxu0 0.0
        %2086 = vmatprep.subr.mxu0 0.0
        %2087 = vmatpush1.msra.mxu0 0.0
        %2088 = vmatprep.subr.mxu0 0.0
        %2089 = vmatpush1.msra.mxu0 0.0
        %2090 = vmatprep.subr.mxu0 0.0
        %2091 = vmatpush1.msra.mxu0 0.0
        %2092 = vmatprep.subr.mxu0 0.0
        %2093 = vmatpush1.msra.mxu0 0.0
        %2094 = vmatprep.subr.mxu0 0.0
        %2095 = vmatpush1.msra.mxu0 0.0
        %2096 = vmatprep.subr.mxu0 0.0
        %2097 = vmatpush1.msra.mxu0 0.0
        %2098 = vmatprep.subr.mxu0 0.0
        %2099 = vmatpush1.msra.mxu0 0.0
        %2100 = vmatprep.subr.mxu0 0.0
        %2101 = vmatpush1.msra.mxu0 0.0
        %2102 = vmatprep.subr.mxu0 0.0
        %2103 = vmatpush1.msra.mxu0 0.0
        %2104 = vmatprep.subr.mxu0 0.0
        %2105 = vmatpush1.msra.mxu0 0.0
        %2106 = vmatprep.subr.mxu0 0.0
        %2107 = vmatpush1.msra.mxu0 0.0
        %2108 = vmatprep.mubr.f32.mxu0 0.0
        %2109 = vmatmul.mubr.f32.gmra.mrb[0].mxu0 %v2036
        %v2110 = vpop.f32.mrb[0].mxu0
        %v2111 = vadd.f32 0.0, %v2110
        %v2112 = vpop.f32.mrb[0].mxu0
        %v2113 = vadd.f32 0.0, %v2112
        %2114 = vdwg.mxu0
        %v2115 = vadd.f32 %v2014, %v2111
        %v2116 = vadd.f32 %v2015, %v2113
        %v2117 = vld [vmem:[%s5] sm:$0xf]
        %2119 = vset.pattern.permute.xlu0 0
        %2120 = vperm.xlu0 %2119, %v2117
        %v2121 = vpop.permute.xlu0 %2120
        %v2123 = vmul.f32 %v2115, %v2121
        %v2124 = vmul.f32 %v2116, %v2121
        %v2125 = vld [vmem:[%s6] sm:$0xf]
        %2127 = vset.pattern.permute.xlu0 0
        %2128 = vperm.xlu0 %2127, %v2125
        %v2129 = vpop.permute.xlu0 %2128
        %v2131 = vadd.f32 %v2123, %v2129
        %v2132 = vadd.f32 %v2124, %v2129
        %v2133 = vcombine.high %v312, %v312
        %v2135 = vadd.f32 %v2131, %v312
        %v2136 = vadd.f32 %v2132, %v2133
        %v2137 = vmax.f32 %v2135, 0.0
        %v2138 = vmax.f32 %v2136, 0.0
        %v2141 = vcombine.low %v2137, %v2138
        %2143 = vst [vmem:[%s271] sm:$0xff] %v2141
        %s2144 = sand.u32 %s181, 1
        %s2145 = scalar_lea.sflag [#allocation4], %s2144
        %s2146 = sand.u32 %s181, 1
        %s2147 = smul.addr %s2146, 8
        %s2148 = scalar_lea.vmem [#allocation3], %s2147
        // Predicated region
        $region49: #{tpu_custom_call.1} parent=47 // pred_check
          %p2149 = pneg %p191
        $region50: #{tpu_custom_call.1} parent=47 // pred_check_branch
          %2151 = sbr.rel (%p2149) target = $region52
        $region51: #{tpu_custom_call.1} parent=47 // pred_region
          %s2153 = ssub.s32 128, 128
          %2154 = vsyncadd %s2145, %s2153
          %s2155 = smul.addr %s21, 2
          %s2156 = smul.addr %s2155, 64
          %s2157 = scalar_lea.hbm %s7, %s2156
          %s2159 = sshll.u32 %s2148, 4
          %s2160 = int_to_ptr.vmem [resolvable:$true] %s2159
          %2162 = dma.vmem_to_hbm [thread:$0]  %s2160, 128, %s2157, %s2145
        $region52: #{tpu_custom_call.1} parent=47 // pred_fallthru
          _
      $region48: #{tpu_custom_call.1} parent=5 // pred_fallthru
        _
      %p2163 = scmp.le.s32.totalorder 2, %s16
      // Predicated region
      $region53: #{tpu_custom_call.1} parent=5 // pred_check
        %p2164 = pneg %p2163
      $region54: #{tpu_custom_call.1} parent=5 // pred_check_branch
        %2166 = sbr.rel (%p2164) target = $region56
      $region55: #{tpu_custom_call.1} parent=5 // pred_region
        %s2167 = ssub.s32 %s16, 2
        // Predicated region
        $region57: #{tpu_custom_call.1} parent=55 // pred_check
          %p2168 = pneg %p197
        $region58: #{tpu_custom_call.1} parent=55 // pred_check_branch
          %2170 = sbr.rel (%p2168) target = $region60
        $region59: #{tpu_custom_call.1} parent=55 // pred_region
          %s2171 = sand.u32 %s182, 1
          %s2172 = scalar_lea.sflag [#allocation4], %s2171
          %s2173 = sand.u32 %s182, 1
          %s2174 = smul.addr %s2173, 8
          %s2175 = scalar_lea.vmem [#allocation3], %s2174
          %2176 = dma.done %s2172, 128
        $region60: #{tpu_custom_call.1} parent=55 // pred_fallthru
          _
      $region56: #{tpu_custom_call.1} parent=5 // pred_fallthru
        _
    $region6: #{tpu_custom_call.1} parent=1 // loop_footer
      %s20 = sadd.s32 1, %s16
    $region7: #{tpu_custom_call.1} parent=1 // loop_footer_branch
      %15 = sbr.rel target = $region3
    $region8: #{tpu_custom_call.1} parent=1 // loop_exit
      _
    %2177 = vsyncpa [#allocation4], 1
    %s2178 = scalar_lea.sflag [#allocation4], 1
    %2179 = vsyncpa %s2178, 1

</llo_original>
